<compile_context>
chip_gen: v6e
topology: v6e:2x2x1
jax: 0.10.0
libtpu: 0.0.40
codegen_flags: <defaults>
</compile_context>

<pallas_src>
import math
import jax
import jax.numpy as jnp
from jax.experimental import pallas as pl
from jax.experimental.pallas import tpu as pltpu

# ----------------------- small stand-in dimensions -----------------------
B = 2              # batch
S = 8              # sequence length
VOCAB = 100        # stand-in vocab
D_TXT = 32         # text_embedding_dim  (stand-in for e.g. 768)
D_FF = 64          # transformer FFN hidden
C_IMG = 3
IMG = 16           # stand-in for settings.IMAGE_MODEL_INPUT_SIZE (224)
PATCH = 4
N_PATCH = (IMG // PATCH) ** 2          # 16 patches
PATCH_DIM = C_IMG * PATCH * PATCH      # 48
D_IMG_HID = 64
D_IMG = 64         # img_embedding_dim   (stand-in for 2048)
D_FUSE_IN = D_TXT + D_IMG              # fusion_dim
D_FUSE = 32        # fusion_output_dim
LANES = 128        # slab lane width / lane-dense output width

# ------------------- packed weight-slab row offsets (bf16) -------------------
# All offsets / extents are multiples of 16 so bf16 sublane-packing stays aligned.
R_WQ, R_WK, R_WV, R_WO = 0, 32, 64, 96          # (D_TXT, D_TXT) each
R_W1 = 128                                      # (D_TXT, D_FF)
R_W2 = 160                                      # (D_FF, D_TXT)
R_WP = 224                                      # (PATCH_DIM, D_IMG_HID)
R_WPRJ = 272                                    # (D_IMG_HID, D_IMG), 1/N_PATCH folded in
R_WFT = 336                                     # (D_TXT, D_FUSE)   fusion W rows for text
R_WFI = 368                                     # (D_IMG, D_FUSE)   fusion W rows for image
W_ROWS = 432

# ------------------- packed bias/LN/classifier slab rows (f32) ---------------
RB_BQ, RB_BK, RB_BV, RB_BO = 0, 1, 2, 3
RB_LN1G, RB_LN1B = 4, 5
RB_B1, RB_B2 = 6, 7
RB_LN2G, RB_LN2B = 8, 9
RB_BP, RB_BPRJ = 10, 11
RB_BF = 12
RB_WC = 13                                      # classifier weight stored as a lane row
RB_BC = 14                                      # classifier bias (scalar at lane 0)
B_ROWS = 16


def _layernorm(x, g, b, eps=1e-5):
    mu = jnp.mean(x, axis=-1, keepdims=True)
    var = jnp.mean((x - mu) ** 2, axis=-1, keepdims=True)
    return (x - mu) * jax.lax.rsqrt(var + eps) * g + b


# ------------------------- single fused kernel ------------------------------
def fused_forward_kernel(emb_ref, mask_ref, patch_ref, avail_ref, w_ref, b_ref, out_ref):
    f32 = jnp.float32
    bf16 = jnp.bfloat16

    def brow(r, w):
        # (1, w) f32 bias/LN row; lane prefix slice (offset 0) -> no relayout.
        return b_ref[r:r + 1, :w]

    # ------------------ text encoder (batched, all in VMEM) ------------------
    # TODO(synk): stand-in for HuggingFace AutoModel (pretrained transformer);
    #             single encoder layer with deterministic weights.
    x2 = emb_ref[...].reshape(B * S, D_TXT)                 # (B*S, D_TXT) f32
    x2b = x2.astype(bf16)

    # Three separate (D,D) matmuls (lane-0 slices of the slab) instead of a packed
    # QKV matmul + non-128-aligned output slices. 1/sqrt(D) is folded into Wq/bq.
    q2 = jnp.dot(x2b, w_ref[R_WQ:R_WQ + D_TXT, :D_TXT], preferred_element_type=f32) + brow(RB_BQ, D_TXT)
    k2 = jnp.dot(x2b, w_ref[R_WK:R_WK + D_TXT, :D_TXT], preferred_element_type=f32) + brow(RB_BK, D_TXT)
    v2 = jnp.dot(x2b, w_ref[R_WV:R_WV + D_TXT, :D_TXT], preferred_element_type=f32) + brow(RB_BV, D_TXT)
    q = q2.reshape(B, S, D_TXT).astype(bf16)
    k = k2.reshape(B, S, D_TXT).astype(bf16)
    v = v2.reshape(B, S, D_TXT).astype(bf16)

    # batched attention — contraction on the lane axis, no explicit transpose
    scores = jnp.einsum('bqd,bkd->bqk', q, k, preferred_element_type=f32)
    scores = scores + mask_ref[...]                         # (B,1,S) broadcast -> (B,S,S)
    scores = scores - jnp.max(scores, axis=-1, keepdims=True)
    p = jnp.exp(scores)                                     # f32 (EUP)
    inv_den = pl.reciprocal(jnp.sum(p, axis=-1, keepdims=True), approx=True)
    p = (p * inv_den).astype(bf16)
    ctx = jnp.einsum('bqk,bkd->bqd', p, v, preferred_element_type=f32)

    ctx2 = ctx.reshape(B * S, D_TXT).astype(bf16)
    attn2 = jnp.dot(ctx2, w_ref[R_WO:R_WO + D_TXT, :D_TXT], preferred_element_type=f32) + brow(RB_BO, D_TXT)
    h2 = _layernorm(x2 + attn2, brow(RB_LN1G, D_TXT), brow(RB_LN1B, D_TXT))   # f32

    ff_in = jnp.maximum(
        jnp.dot(h2.astype(bf16), w_ref[R_W1:R_W1 + D_TXT, :D_FF],
                preferred_element_type=f32) + brow(RB_B1, D_FF), 0.0)
    ff2 = jnp.dot(ff_in.astype(bf16), w_ref[R_W2:R_W2 + D_FF, :D_TXT],
                  preferred_element_type=f32) + brow(RB_B2, D_TXT)
    hidden = _layernorm(h2 + ff2, brow(RB_LN2G, D_TXT), brow(RB_LN2B, D_TXT)).reshape(B, S, D_TXT)
    text_features = hidden[:, 0, :]                         # CLS token (B, D_TXT), stays in VMEM

    # ------------------ image encoder (batched, all in VMEM) -----------------
    # TODO(synk): stand-in for torchvision resnet50 (fc=Identity); patch-matmul +
    #             ReLU + global average pool + projection to D_IMG pooled features.
    pt2 = patch_ref[...].reshape(B * N_PATCH, PATCH_DIM).astype(bf16)
    ph2 = jnp.maximum(
        jnp.dot(pt2, w_ref[R_WP:R_WP + PATCH_DIM, :D_IMG_HID],
                preferred_element_type=f32) + brow(RB_BP, D_IMG_HID), 0.0)
    ph = ph2.reshape(B, N_PATCH, D_IMG_HID)
    pooled = jnp.sum(ph, axis=1)                            # (B, D_IMG_HID); 1/N_PATCH folded into Wprj
    img_feat = jnp.dot(pooled.astype(bf16), w_ref[R_WPRJ:R_WPRJ + D_IMG_HID, :D_IMG],
                       preferred_element_type=f32) + brow(RB_BPRJ, D_IMG)

    # --------------- fusion + classifier (exact module semantics) ------------
    # image_features starts as zeros and only valid rows are filled; NaN-safe select.
    avail = avail_ref[...]                                  # (B, 1) f32
    img = jnp.where(avail > 0.0, img_feat, 0.0)             # (B, D_IMG)
    # concat([text, img], dim=1) @ W1  ==  text @ W1[:D_TXT] + img @ W1[D_TXT:]
    pre = (jnp.dot(text_features.astype(bf16), w_ref[R_WFT:R_WFT + D_TXT, :D_FUSE],
                   preferred_element_type=f32)
           + jnp.dot(img.astype(bf16), w_ref[R_WFI:R_WFI + D_IMG, :D_FUSE],
                     preferred_element_type=f32)
           + brow(RB_BF, D_FUSE))
    fh = jnp.maximum(pre, 0.0)                              # ReLU; nn.Dropout(0.5) is identity in eval

    # classifier: (D_FUSE, 1) weight kept as a lane row -> lane reduce (XLU) instead
    # of a 1-column matmul; lane-dense (B, 128) store, lane 0 sliced in the wrapper.
    wc_row = brow(RB_WC, D_FUSE)                            # (1, D_FUSE)
    bc = b_ref[RB_BC:RB_BC + 1, 0:1]                        # (1, 1)
    logit = jnp.sum(fh * wc_row, axis=-1, keepdims=True) + bc   # (B, 1)
    out_ref[...] = jnp.broadcast_to(logit, (B, LANES))


# ------------------------------ wrapper -------------------------------------
def fused_forward_pallas(emb, add_mask, patches, avail, w_slab, b_slab):
    # Single pallas_call, no grid: one invocation, every operand resident in VMEM
    # (~130 KB total), only the lane-dense (B, 128) logit slab goes back to HBM.
    # TODO(synk): on v7x with non-trivial B, add a parallel batch grid axis (2 TCs)
    #             and tile activations to the 64 MiB VMEM budget.
    flops = 2 * (3 * B * S * D_TXT * D_TXT            # q/k/v projections
                 + 2 * B * S * S * D_TXT               # attention score + context
                 + B * S * D_TXT * D_TXT               # output projection
                 + 2 * B * S * D_TXT * D_FF            # FFN
                 + B * N_PATCH * PATCH_DIM * D_IMG_HID # patch linear
                 + B * D_IMG_HID * D_IMG               # image projection
                 + B * D_FUSE_IN * D_FUSE              # fusion linear
                 + B * D_FUSE)                         # classifier
    operands = (emb, add_mask, patches, avail, w_slab, b_slab)
    bytes_accessed = sum(int(a.size) * a.dtype.itemsize for a in operands) + B * LANES * 4
    return pl.pallas_call(
        fused_forward_kernel,
        out_shape=jax.ShapeDtypeStruct((B, LANES), jnp.float32),
        compiler_params=pltpu.CompilerParams(vmem_limit_bytes=32 * 1024 * 1024),
        cost_estimate=pl.CostEstimate(flops=flops,
                                      transcendentals=B * S * (S + 1) + B * S,
                                      bytes_accessed=bytes_accessed),
    )(*operands)


def multimodal_forward(input_ids, attention_mask, image, image_available,
                       tok_emb, pos_emb, w_slab, b_slab):
    # ---- glue: embedding lookup (gather), additive mask, patchify, avail mask ----
    # TODO(synk): at production sizes fold the gather/mask/patchify into the Pallas
    #             call via PrefetchScalarGridSpec + pl.Element row gather to avoid
    #             the HBM round trip for the (B,S,D) embedding tensor.
    emb = tok_emb[input_ids] + pos_emb[None, :, :]                               # (B, S, D_TXT)
    add_mask = ((attention_mask.astype(jnp.float32) - 1.0) * 1e9)[:, None, :]    # (B, 1, S)
    p = image.reshape(B, C_IMG, IMG // PATCH, PATCH, IMG // PATCH, PATCH)
    p = p.transpose(0, 2, 4, 1, 3, 5).reshape(B, N_PATCH, PATCH_DIM)             # (B, N_PATCH, PATCH_DIM)
    avail = image_available.astype(jnp.float32).reshape(B, 1)

    # ---- fused Pallas kernel: text enc + image enc + fusion head ----
    logits = fused_forward_pallas(emb, add_mask, p, avail, w_slab, b_slab)       # (B, 128)
    return logits[:, 0]                                                          # .squeeze(-1) -> (B,)


# ------------------------------ param packing --------------------------------
def build_param_slabs(key):
    ks = jax.random.split(key, 10)

    def init_w(k, shape):
        return (jax.random.normal(k, shape, dtype=jnp.float32)
                / jnp.sqrt(jnp.float32(shape[0])))

    scale = 1.0 / math.sqrt(D_TXT)                      # attention scale, folded into Wq (and bq)
    wq = init_w(ks[0], (D_TXT, D_TXT)) * scale
    wk = init_w(ks[1], (D_TXT, D_TXT))
    wv = init_w(ks[2], (D_TXT, D_TXT))
    wo = init_w(ks[3], (D_TXT, D_TXT))
    w1 = init_w(ks[4], (D_TXT, D_FF))
    w2 = init_w(ks[5], (D_FF, D_TXT))
    wp = init_w(ks[6], (PATCH_DIM, D_IMG_HID))
    wprj = init_w(ks[7], (D_IMG_HID, D_IMG)) * (1.0 / N_PATCH)   # avg-pool 1/N folded in
    w_fuse = init_w(ks[8], (D_FUSE_IN, D_FUSE))         # nn.Linear(fusion_dim, fusion_output_dim)
    wc = init_w(ks[9], (D_FUSE, 1))                     # classifier weight

    w_slab = jnp.zeros((W_ROWS, LANES), jnp.float32)

    def put(slab, row, w):
        return slab.at[row:row + w.shape[0], :w.shape[1]].set(w)

    w_slab = put(w_slab, R_WQ, wq)
    w_slab = put(w_slab, R_WK, wk)
    w_slab = put(w_slab, R_WV, wv)
    w_slab = put(w_slab, R_WO, wo)
    w_slab = put(w_slab, R_W1, w1)
    w_slab = put(w_slab, R_W2, w2)
    w_slab = put(w_slab, R_WP, wp)
    w_slab = put(w_slab, R_WPRJ, wprj)
    w_slab = put(w_slab, R_WFT, w_fuse[:D_TXT, :])
    w_slab = put(w_slab, R_WFI, w_fuse[D_TXT:, :])
    w_slab = w_slab.astype(jnp.bfloat16)                # MXU-native, halves DMA bytes

    # bias / LN / classifier slab (f32; elementwise math stays f32 on all chips).
    # NOTE: bq shares the 1/sqrt(D) fold with Wq — it is zero here, but keep the
    #       `* scale` when loading real pretrained biases.
    b_slab = jnp.zeros((B_ROWS, LANES), jnp.float32)
    b_slab = b_slab.at[RB_LN1G, :D_TXT].set(1.0)        # LayerNorm gammas
    b_slab = b_slab.at[RB_LN2G, :D_TXT].set(1.0)
    b_slab = b_slab.at[RB_WC, :D_FUSE].set(wc[:, 0])    # classifier weight as a lane row
    # all linear biases + classifier bias are zero in this stand-in.
    return w_slab, b_slab


# ------------------------------- main --------------------------------------
if __name__ == "__main__":
    key = jax.random.PRNGKey(0)
    ks = jax.random.split(key, 6)

    tok_emb = 0.02 * jax.random.normal(ks[0], (VOCAB, D_TXT), dtype=jnp.float32)
    pos_emb = 0.02 * jax.random.normal(ks[1], (S, D_TXT), dtype=jnp.float32)
    w_slab, b_slab = build_param_slabs(ks[2])

    # example inputs (small shapes consistent with the forward signature)
    input_ids = jax.random.randint(ks[3], (B, S), 0, VOCAB)
    attention_mask = jnp.array([[1, 1, 1, 1, 1, 1, 1, 1],
                                [1, 1, 1, 1, 1, 0, 0, 0]], dtype=jnp.int32)
    image = jax.random.normal(ks[4], (B, C_IMG, IMG, IMG), dtype=jnp.float32)
    image_available = jnp.array([1, 0], dtype=jnp.int32)   # second sample has no image

    forward = jax.jit(multimodal_forward)
    logits = forward(input_ids, attention_mask, image, image_available,
                     tok_emb, pos_emb, w_slab, b_slab)
    jax.block_until_ready(logits)
    assert logits.shape == (B,) and logits.dtype == jnp.float32
    assert bool(jnp.all(jnp.isfinite(logits)))
    print("KERNEL_OK")
</pallas_src>

<mosaic_0001>
module attributes {stable_mosaic.version = 11 : i64} {
  func.func @fused_forward_kernel(%arg0: memref<2x8x32xf32, #tpu.memory_space<vmem>>, %arg1: memref<2x1x8xf32, #tpu.memory_space<vmem>>, %arg2: memref<2x16x48xf32, #tpu.memory_space<vmem>>, %arg3: memref<2x1xf32, #tpu.memory_space<vmem>>, %arg4: memref<432x128xbf16, #tpu.memory_space<vmem>>, %arg5: memref<16x128xf32, #tpu.memory_space<vmem>>, %arg6: memref<2x128xf32, #tpu.memory_space<vmem>>) attributes {dimension_semantics = [], scalar_prefetch = 0 : i64, scratch_operands = 0 : i64, tpu.core_type = #tpu.core_type<tc>} {
    %c0 = arith.constant 0 : index
    %c0_0 = arith.constant 0 : index
    %c0_1 = arith.constant 0 : index
    %0 = vector.load %arg0[%c0, %c0_0, %c0_1] : memref<2x8x32xf32, #tpu.memory_space<vmem>>, vector<2x8x32xf32>
    %1 = vector.shape_cast %0 : vector<2x8x32xf32> to vector<16x32xf32>
    %2 = arith.truncf %1 : vector<16x32xf32> to vector<16x32xbf16>
    %c0_2 = arith.constant 0 : index
    %c0_3 = arith.constant 0 : index
    %3 = vector.load %arg4[%c0_2, %c0_3] : memref<432x128xbf16, #tpu.memory_space<vmem>>, vector<32x32xbf16>
    %cst = arith.constant dense<0.000000e+00> : vector<16x32xf32>
    %4 = tpu.matmul %2, %3, %cst {dimension_numbers = #tpu.dot_dimension_numbers<[1], [0], [0], [1], [0, 0, 1, 1], [], []>} : vector<16x32xbf16>, vector<32x32xbf16>, vector<16x32xf32> -> vector<16x32xf32>
    %c0_4 = arith.constant 0 : index
    %c0_5 = arith.constant 0 : index
    %5 = vector.load %arg5[%c0_4, %c0_5] : memref<16x128xf32, #tpu.memory_space<vmem>>, vector<1x32xf32>
    %6 = vector.broadcast %5 : vector<1x32xf32> to vector<16x32xf32>
    %7 = arith.addf %4, %6 : vector<16x32xf32>
    %c32 = arith.constant 32 : index
    %c0_6 = arith.constant 0 : index
    %8 = vector.load %arg4[%c32, %c0_6] : memref<432x128xbf16, #tpu.memory_space<vmem>>, vector<32x32xbf16>
    %cst_7 = arith.constant dense<0.000000e+00> : vector<16x32xf32>
    %9 = tpu.matmul %2, %8, %cst_7 {dimension_numbers = #tpu.dot_dimension_numbers<[1], [0], [0], [1], [0, 0, 1, 1], [], []>} : vector<16x32xbf16>, vector<32x32xbf16>, vector<16x32xf32> -> vector<16x32xf32>
    %c1 = arith.constant 1 : index
    %c0_8 = arith.constant 0 : index
    %10 = vector.load %arg5[%c1, %c0_8] : memref<16x128xf32, #tpu.memory_space<vmem>>, vector<1x32xf32>
    %11 = vector.broadcast %10 : vector<1x32xf32> to vector<16x32xf32>
    %12 = arith.addf %9, %11 : vector<16x32xf32>
    %c64 = arith.constant 64 : index
    %c0_9 = arith.constant 0 : index
    %13 = vector.load %arg4[%c64, %c0_9] : memref<432x128xbf16, #tpu.memory_space<vmem>>, vector<32x32xbf16>
    %cst_10 = arith.constant dense<0.000000e+00> : vector<16x32xf32>
    %14 = tpu.matmul %2, %13, %cst_10 {dimension_numbers = #tpu.dot_dimension_numbers<[1], [0], [0], [1], [0, 0, 1, 1], [], []>} : vector<16x32xbf16>, vector<32x32xbf16>, vector<16x32xf32> -> vector<16x32xf32>
    %c2 = arith.constant 2 : index
    %c0_11 = arith.constant 0 : index
    %15 = vector.load %arg5[%c2, %c0_11] : memref<16x128xf32, #tpu.memory_space<vmem>>, vector<1x32xf32>
    %16 = vector.broadcast %15 : vector<1x32xf32> to vector<16x32xf32>
    %17 = arith.addf %14, %16 : vector<16x32xf32>
    %18 = vector.shape_cast %7 : vector<16x32xf32> to vector<2x8x32xf32>
    %19 = arith.truncf %18 : vector<2x8x32xf32> to vector<2x8x32xbf16>
    %20 = vector.shape_cast %12 : vector<16x32xf32> to vector<2x8x32xf32>
    %21 = arith.truncf %20 : vector<2x8x32xf32> to vector<2x8x32xbf16>
    %22 = vector.shape_cast %17 : vector<16x32xf32> to vector<2x8x32xf32>
    %23 = arith.truncf %22 : vector<2x8x32xf32> to vector<2x8x32xbf16>
    "tpu.trace_start"() <{level = 10 : i32, message = "bqd,bkd->bqk"}> : () -> ()
    %cst_12 = arith.constant dense<0.000000e+00> : vector<2x8x8xf32>
    %24 = tpu.matmul %19, %21, %cst_12 {dimension_numbers = #tpu.dot_dimension_numbers<[2], [2], [1], [1], [0, 0, 0, 1, 1, 1], [0], [0]>} : vector<2x8x32xbf16>, vector<2x8x32xbf16>, vector<2x8x8xf32> -> vector<2x8x8xf32>
    "tpu.trace_stop"() : () -> ()
    %c0_13 = arith.constant 0 : index
    %c0_14 = arith.constant 0 : index
    %c0_15 = arith.constant 0 : index
    %25 = vector.load %arg1[%c0_13, %c0_14, %c0_15] : memref<2x1x8xf32, #tpu.memory_space<vmem>>, vector<2x1x8xf32>
    %26 = vector.broadcast %25 : vector<2x1x8xf32> to vector<2x8x8xf32>
    %27 = arith.addf %24, %26 : vector<2x8x8xf32>
    %cst_16 = arith.constant dense<0xFF800000> : vector<2x8xf32>
    %28 = vector.multi_reduction <maximumf>, %27, %cst_16 [2] : vector<2x8x8xf32> to vector<2x8xf32>
    %29 = vector.shape_cast %28 : vector<2x8xf32> to vector<2x8x1xf32>
    %30 = vector.broadcast %29 : vector<2x8x1xf32> to vector<2x8x8xf32>
    %31 = arith.subf %27, %30 : vector<2x8x8xf32>
    %32 = math.exp %31 : vector<2x8x8xf32>
    %cst_17 = arith.constant dense<0.000000e+00> : vector<2x8xf32>
    %33 = vector.multi_reduction <add>, %32, %cst_17 [2] : vector<2x8x8xf32> to vector<2x8xf32>
    %34 = vector.shape_cast %33 : vector<2x8xf32> to vector<2x8x1xf32>
    %35 = tpu.reciprocal %34 {approx = true} : vector<2x8x1xf32> -> vector<2x8x1xf32>
    %36 = vector.broadcast %35 : vector<2x8x1xf32> to vector<2x8x8xf32>
    %37 = arith.mulf %32, %36 : vector<2x8x8xf32>
    %38 = arith.truncf %37 : vector<2x8x8xf32> to vector<2x8x8xbf16>
    "tpu.trace_start"() <{level = 10 : i32, message = "bqk,bkd->bqd"}> : () -> ()
    %cst_18 = arith.constant dense<0.000000e+00> : vector<2x8x32xf32>
    %39 = tpu.matmul %38, %23, %cst_18 {dimension_numbers = #tpu.dot_dimension_numbers<[2], [1], [1], [2], [0, 0, 0, 1, 1, 2], [0], [0]>} : vector<2x8x8xbf16>, vector<2x8x32xbf16>, vector<2x8x32xf32> -> vector<2x8x32xf32>
    "tpu.trace_stop"() : () -> ()
    %40 = vector.shape_cast %39 : vector<2x8x32xf32> to vector<16x32xf32>
    %41 = arith.truncf %40 : vector<16x32xf32> to vector<16x32xbf16>
    %c96 = arith.constant 96 : index
    %c0_19 = arith.constant 0 : index
    %42 = vector.load %arg4[%c96, %c0_19] : memref<432x128xbf16, #tpu.memory_space<vmem>>, vector<32x32xbf16>
    %cst_20 = arith.constant dense<0.000000e+00> : vector<16x32xf32>
    %43 = tpu.matmul %41, %42, %cst_20 {dimension_numbers = #tpu.dot_dimension_numbers<[1], [0], [0], [1], [0, 0, 1, 1], [], []>} : vector<16x32xbf16>, vector<32x32xbf16>, vector<16x32xf32> -> vector<16x32xf32>
    %c3 = arith.constant 3 : index
    %c0_21 = arith.constant 0 : index
    %44 = vector.load %arg5[%c3, %c0_21] : memref<16x128xf32, #tpu.memory_space<vmem>>, vector<1x32xf32>
    %45 = vector.broadcast %44 : vector<1x32xf32> to vector<16x32xf32>
    %46 = arith.addf %43, %45 : vector<16x32xf32>
    %47 = arith.addf %1, %46 : vector<16x32xf32>
    %c4 = arith.constant 4 : index
    %c0_22 = arith.constant 0 : index
    %48 = vector.load %arg5[%c4, %c0_22] : memref<16x128xf32, #tpu.memory_space<vmem>>, vector<1x32xf32>
    %c5 = arith.constant 5 : index
    %c0_23 = arith.constant 0 : index
    %49 = vector.load %arg5[%c5, %c0_23] : memref<16x128xf32, #tpu.memory_space<vmem>>, vector<1x32xf32>
    %cst_24 = arith.constant dense<0.000000e+00> : vector<16xf32>
    %50 = vector.multi_reduction <add>, %47, %cst_24 [1] : vector<16x32xf32> to vector<16xf32>
    %51 = vector.shape_cast %50 : vector<16xf32> to vector<16x1xf32>
    %cst_25 = arith.constant 3.200000e+01 : f32
    %52 = vector.broadcast %cst_25 : f32 to vector<16x1xf32>
    %53 = arith.divf %51, %52 : vector<16x1xf32>
    %54 = vector.broadcast %53 : vector<16x1xf32> to vector<16x32xf32>
    %55 = arith.subf %47, %54 : vector<16x32xf32>
    %56 = arith.mulf %55, %55 : vector<16x32xf32>
    %cst_26 = arith.constant dense<0.000000e+00> : vector<16xf32>
    %57 = vector.multi_reduction <add>, %56, %cst_26 [1] : vector<16x32xf32> to vector<16xf32>
    %58 = vector.shape_cast %57 : vector<16xf32> to vector<16x1xf32>
    %cst_27 = arith.constant 3.200000e+01 : f32
    %59 = vector.broadcast %cst_27 : f32 to vector<16x1xf32>
    %60 = arith.divf %58, %59 : vector<16x1xf32>
    %61 = vector.broadcast %53 : vector<16x1xf32> to vector<16x32xf32>
    %62 = arith.subf %47, %61 : vector<16x32xf32>
    %cst_28 = arith.constant 9.99999974E-6 : f32
    %63 = vector.broadcast %cst_28 : f32 to vector<16x1xf32>
    %64 = arith.addf %60, %63 : vector<16x1xf32>
    %65 = math.rsqrt %64 : vector<16x1xf32>
    %66 = vector.broadcast %65 : vector<16x1xf32> to vector<16x32xf32>
    %67 = arith.mulf %62, %66 : vector<16x32xf32>
    %68 = vector.broadcast %48 : vector<1x32xf32> to vector<16x32xf32>
    %69 = arith.mulf %67, %68 : vector<16x32xf32>
    %70 = vector.broadcast %49 : vector<1x32xf32> to vector<16x32xf32>
    %71 = arith.addf %69, %70 : vector<16x32xf32>
    %72 = arith.truncf %71 : vector<16x32xf32> to vector<16x32xbf16>
    %c128 = arith.constant 128 : index
    %c0_29 = arith.constant 0 : index
    %73 = vector.load %arg4[%c128, %c0_29] : memref<432x128xbf16, #tpu.memory_space<vmem>>, vector<32x64xbf16>
    %cst_30 = arith.constant dense<0.000000e+00> : vector<16x64xf32>
    %74 = tpu.matmul %72, %73, %cst_30 {dimension_numbers = #tpu.dot_dimension_numbers<[1], [0], [0], [1], [0, 0, 1, 1], [], []>} : vector<16x32xbf16>, vector<32x64xbf16>, vector<16x64xf32> -> vector<16x64xf32>
    %c6 = arith.constant 6 : index
    %c0_31 = arith.constant 0 : index
    %75 = vector.load %arg5[%c6, %c0_31] : memref<16x128xf32, #tpu.memory_space<vmem>>, vector<1x64xf32>
    %76 = vector.broadcast %75 : vector<1x64xf32> to vector<16x64xf32>
    %77 = arith.addf %74, %76 : vector<16x64xf32>
    %cst_32 = arith.constant 0.000000e+00 : f32
    %78 = vector.broadcast %cst_32 : f32 to vector<16x64xf32>
    %79 = arith.maximumf %77, %78 : vector<16x64xf32>
    %80 = arith.truncf %79 : vector<16x64xf32> to vector<16x64xbf16>
    %c160 = arith.constant 160 : index
    %c0_33 = arith.constant 0 : index
    %81 = vector.load %arg4[%c160, %c0_33] : memref<432x128xbf16, #tpu.memory_space<vmem>>, vector<64x32xbf16>
    %cst_34 = arith.constant dense<0.000000e+00> : vector<16x32xf32>
    %82 = tpu.matmul %80, %81, %cst_34 {dimension_numbers = #tpu.dot_dimension_numbers<[1], [0], [0], [1], [0, 0, 1, 1], [], []>} : vector<16x64xbf16>, vector<64x32xbf16>, vector<16x32xf32> -> vector<16x32xf32>
    %c7 = arith.constant 7 : index
    %c0_35 = arith.constant 0 : index
    %83 = vector.load %arg5[%c7, %c0_35] : memref<16x128xf32, #tpu.memory_space<vmem>>, vector<1x32xf32>
    %84 = vector.broadcast %83 : vector<1x32xf32> to vector<16x32xf32>
    %85 = arith.addf %82, %84 : vector<16x32xf32>
    %86 = arith.addf %71, %85 : vector<16x32xf32>
    %c8 = arith.constant 8 : index
    %c0_36 = arith.constant 0 : index
    %87 = vector.load %arg5[%c8, %c0_36] : memref<16x128xf32, #tpu.memory_space<vmem>>, vector<1x32xf32>
    %c9 = arith.constant 9 : index
    %c0_37 = arith.constant 0 : index
    %88 = vector.load %arg5[%c9, %c0_37] : memref<16x128xf32, #tpu.memory_space<vmem>>, vector<1x32xf32>
    %cst_38 = arith.constant dense<0.000000e+00> : vector<16xf32>
    %89 = vector.multi_reduction <add>, %86, %cst_38 [1] : vector<16x32xf32> to vector<16xf32>
    %90 = vector.shape_cast %89 : vector<16xf32> to vector<16x1xf32>
    %cst_39 = arith.constant 3.200000e+01 : f32
    %91 = vector.broadcast %cst_39 : f32 to vector<16x1xf32>
    %92 = arith.divf %90, %91 : vector<16x1xf32>
    %93 = vector.broadcast %92 : vector<16x1xf32> to vector<16x32xf32>
    %94 = arith.subf %86, %93 : vector<16x32xf32>
    %95 = arith.mulf %94, %94 : vector<16x32xf32>
    %cst_40 = arith.constant dense<0.000000e+00> : vector<16xf32>
    %96 = vector.multi_reduction <add>, %95, %cst_40 [1] : vector<16x32xf32> to vector<16xf32>
    %97 = vector.shape_cast %96 : vector<16xf32> to vector<16x1xf32>
    %cst_41 = arith.constant 3.200000e+01 : f32
    %98 = vector.broadcast %cst_41 : f32 to vector<16x1xf32>
    %99 = arith.divf %97, %98 : vector<16x1xf32>
    %100 = vector.broadcast %92 : vector<16x1xf32> to vector<16x32xf32>
    %101 = arith.subf %86, %100 : vector<16x32xf32>
    %cst_42 = arith.constant 9.99999974E-6 : f32
    %102 = vector.broadcast %cst_42 : f32 to vector<16x1xf32>
    %103 = arith.addf %99, %102 : vector<16x1xf32>
    %104 = math.rsqrt %103 : vector<16x1xf32>
    %105 = vector.broadcast %104 : vector<16x1xf32> to vector<16x32xf32>
    %106 = arith.mulf %101, %105 : vector<16x32xf32>
    %107 = vector.broadcast %87 : vector<1x32xf32> to vector<16x32xf32>
    %108 = arith.mulf %106, %107 : vector<16x32xf32>
    %109 = vector.broadcast %88 : vector<1x32xf32> to vector<16x32xf32>
    %110 = arith.addf %108, %109 : vector<16x32xf32>
    %111 = vector.shape_cast %110 : vector<16x32xf32> to vector<2x8x32xf32>
    %112 = vector.extract_strided_slice %111 {offsets = [0, 0, 0], sizes = [2, 1, 32], strides = [1, 1, 1]} : vector<2x8x32xf32> to vector<2x1x32xf32>
    %113 = vector.shape_cast %112 : vector<2x1x32xf32> to vector<2x32xf32>
    %c0_43 = arith.constant 0 : index
    %c0_44 = arith.constant 0 : index
    %c0_45 = arith.constant 0 : index
    %114 = vector.load %arg2[%c0_43, %c0_44, %c0_45] : memref<2x16x48xf32, #tpu.memory_space<vmem>>, vector<2x16x48xf32>
    %115 = vector.shape_cast %114 : vector<2x16x48xf32> to vector<32x48xf32>
    %116 = arith.truncf %115 : vector<32x48xf32> to vector<32x48xbf16>
    %c224 = arith.constant 224 : index
    %c0_46 = arith.constant 0 : index
    %117 = vector.load %arg4[%c224, %c0_46] : memref<432x128xbf16, #tpu.memory_space<vmem>>, vector<48x64xbf16>
    %cst_47 = arith.constant dense<0.000000e+00> : vector<32x64xf32>
    %118 = tpu.matmul %116, %117, %cst_47 {dimension_numbers = #tpu.dot_dimension_numbers<[1], [0], [0], [1], [0, 0, 1, 1], [], []>} : vector<32x48xbf16>, vector<48x64xbf16>, vector<32x64xf32> -> vector<32x64xf32>
    %c10 = arith.constant 10 : index
    %c0_48 = arith.constant 0 : index
    %119 = vector.load %arg5[%c10, %c0_48] : memref<16x128xf32, #tpu.memory_space<vmem>>, vector<1x64xf32>
    %120 = vector.broadcast %119 : vector<1x64xf32> to vector<32x64xf32>
    %121 = arith.addf %118, %120 : vector<32x64xf32>
    %cst_49 = arith.constant 0.000000e+00 : f32
    %122 = vector.broadcast %cst_49 : f32 to vector<32x64xf32>
    %123 = arith.maximumf %121, %122 : vector<32x64xf32>
    %124 = vector.shape_cast %123 : vector<32x64xf32> to vector<2x16x64xf32>
    %cst_50 = arith.constant dense<0.000000e+00> : vector<2x64xf32>
    %125 = vector.multi_reduction <add>, %124, %cst_50 [1] : vector<2x16x64xf32> to vector<2x64xf32>
    %126 = arith.truncf %125 : vector<2x64xf32> to vector<2x64xbf16>
    %c272 = arith.constant 272 : index
    %c0_51 = arith.constant 0 : index
    %127 = vector.load %arg4[%c272, %c0_51] : memref<432x128xbf16, #tpu.memory_space<vmem>>, vector<64x64xbf16>
    %cst_52 = arith.constant dense<0.000000e+00> : vector<2x64xf32>
    %128 = tpu.matmul %126, %127, %cst_52 {dimension_numbers = #tpu.dot_dimension_numbers<[1], [0], [0], [1], [0, 0, 1, 1], [], []>} : vector<2x64xbf16>, vector<64x64xbf16>, vector<2x64xf32> -> vector<2x64xf32>
    %c11 = arith.constant 11 : index
    %c0_53 = arith.constant 0 : index
    %129 = vector.load %arg5[%c11, %c0_53] : memref<16x128xf32, #tpu.memory_space<vmem>>, vector<1x64xf32>
    %130 = vector.broadcast %129 : vector<1x64xf32> to vector<2x64xf32>
    %131 = arith.addf %128, %130 : vector<2x64xf32>
    %c0_54 = arith.constant 0 : index
    %c0_55 = arith.constant 0 : index
    %132 = vector.load %arg3[%c0_54, %c0_55] : memref<2x1xf32, #tpu.memory_space<vmem>>, vector<2x1xf32>
    %cst_56 = arith.constant 0.000000e+00 : f32
    %133 = vector.broadcast %cst_56 : f32 to vector<2x1xf32>
    %134 = arith.cmpf ogt, %132, %133 : vector<2x1xf32>
    %cst_57 = arith.constant 0.000000e+00 : f32
    %135 = vector.shape_cast %134 : vector<2x1xi1> to vector<2x1xi1>
    %136 = vector.broadcast %135 : vector<2x1xi1> to vector<2x64xi1>
    %137 = vector.broadcast %cst_57 : f32 to vector<2x64xf32>
    %138 = arith.select %136, %131, %137 : vector<2x64xi1>, vector<2x64xf32>
    %139 = arith.truncf %113 : vector<2x32xf32> to vector<2x32xbf16>
    %c336 = arith.constant 336 : index
    %c0_58 = arith.constant 0 : index
    %140 = vector.load %arg4[%c336, %c0_58] : memref<432x128xbf16, #tpu.memory_space<vmem>>, vector<32x32xbf16>
    %cst_59 = arith.constant dense<0.000000e+00> : vector<2x32xf32>
    %141 = tpu.matmul %139, %140, %cst_59 {dimension_numbers = #tpu.dot_dimension_numbers<[1], [0], [0], [1], [0, 0, 1, 1], [], []>} : vector<2x32xbf16>, vector<32x32xbf16>, vector<2x32xf32> -> vector<2x32xf32>
    %142 = arith.truncf %138 : vector<2x64xf32> to vector<2x64xbf16>
    %c368 = arith.constant 368 : index
    %c0_60 = arith.constant 0 : index
    %143 = vector.load %arg4[%c368, %c0_60] : memref<432x128xbf16, #tpu.memory_space<vmem>>, vector<64x32xbf16>
    %cst_61 = arith.constant dense<0.000000e+00> : vector<2x32xf32>
    %144 = tpu.matmul %142, %143, %cst_61 {dimension_numbers = #tpu.dot_dimension_numbers<[1], [0], [0], [1], [0, 0, 1, 1], [], []>} : vector<2x64xbf16>, vector<64x32xbf16>, vector<2x32xf32> -> vector<2x32xf32>
    %145 = arith.addf %141, %144 : vector<2x32xf32>
    %c12 = arith.constant 12 : index
    %c0_62 = arith.constant 0 : index
    %146 = vector.load %arg5[%c12, %c0_62] : memref<16x128xf32, #tpu.memory_space<vmem>>, vector<1x32xf32>
    %147 = vector.broadcast %146 : vector<1x32xf32> to vector<2x32xf32>
    %148 = arith.addf %145, %147 : vector<2x32xf32>
    %cst_63 = arith.constant 0.000000e+00 : f32
    %149 = vector.broadcast %cst_63 : f32 to vector<2x32xf32>
    %150 = arith.maximumf %148, %149 : vector<2x32xf32>
    %c13 = arith.constant 13 : index
    %c0_64 = arith.constant 0 : index
    %151 = vector.load %arg5[%c13, %c0_64] : memref<16x128xf32, #tpu.memory_space<vmem>>, vector<1x32xf32>
    %c14 = arith.constant 14 : index
    %c0_65 = arith.constant 0 : index
    %152 = vector.load %arg5[%c14, %c0_65] : memref<16x128xf32, #tpu.memory_space<vmem>>, vector<1x1xf32>
    %153 = vector.broadcast %151 : vector<1x32xf32> to vector<2x32xf32>
    %154 = arith.mulf %150, %153 : vector<2x32xf32>
    %cst_66 = arith.constant dense<0.000000e+00> : vector<2xf32>
    %155 = vector.multi_reduction <add>, %154, %cst_66 [1] : vector<2x32xf32> to vector<2xf32>
    %156 = vector.shape_cast %155 : vector<2xf32> to vector<2x1xf32>
    %157 = vector.broadcast %152 : vector<1x1xf32> to vector<2x1xf32>
    %158 = arith.addf %156, %157 : vector<2x1xf32>
    %159 = vector.shape_cast %158 : vector<2x1xf32> to vector<2x1xf32>
    %160 = vector.broadcast %159 : vector<2x1xf32> to vector<2x128xf32>
    %c0_67 = arith.constant 0 : index
    %c0_68 = arith.constant 0 : index
    %161 = vector.load %arg6[%c0_67, %c0_68] : memref<2x128xf32, #tpu.memory_space<vmem>>, vector<2x128xf32>
    tpu.vector_store %arg6[%c0_67, %c0_68], %160 {strides = array<i32>} : memref<2x128xf32, #tpu.memory_space<vmem>>, vector<2x128xf32>,
    return
  }
}

</mosaic_0001>

<llo_original>
// kernel: multimodal_forward.1
$region0: #{multimodal_forward.1}
  #allocation0 [shape = 'u32[]', space=smem, size = 0x4, offset = 0x4, fixed_abs, tag = 'smem constant byte address 0x4 - core index']
  #allocation1 [shape = 'u32[144,128]{1,0:T(1,128)}', space=vmem, size = 0x12000, scoped, tag = 'internal scratch']
  %s0 = inlined_call_operand.vmem [shape: f32[2,8,32], index: 0, kind: input, shape index: {}]
  %s1 = inlined_call_operand.vmem [shape: f32[2,1,8], index: 1, kind: input, shape index: {}]
  %s2 = inlined_call_operand.vmem [shape: f32[2,16,48], index: 2, kind: input, shape index: {}]
  %s3 = inlined_call_operand.vmem [shape: f32[2,1], index: 3, kind: input, shape index: {}]
  %s4 = inlined_call_operand.vmem [shape: bf16[432,128], index: 4, kind: input, shape index: {}]
  %s5 = inlined_call_operand.vmem [shape: f32[16,128], index: 5, kind: input, shape index: {}]
  %s6 = inlined_call_operand.vmem [shape: f32[2,128], index: 6, kind: output, shape index: {}]
  %s7 = sld [smem:[#allocation0]]
  $region34: #{multimodal_forward.1} parent=0
    _
  %s9 = ssub.s32 1, %s7
  %s10 = scalar_select 0, %s9, %s7
  // Predicated region
  $region2: #{multimodal_forward.1} parent=0 // pred_check
    _
  $region3: #{multimodal_forward.1} parent=0 // pred_check_branch
    %12 = sbr.rel (0) target = $region5
  $region4: #{multimodal_forward.1} parent=0 // pred_region
    _
  $region5: #{multimodal_forward.1} parent=0 // pred_fallthru
    _
  // Predicated region
  $region6: #{multimodal_forward.1} parent=0 // pred_check
    _
  $region7: #{multimodal_forward.1} parent=0 // pred_check_branch
    %14 = sbr.rel (0) target = $region9
  $region8: #{multimodal_forward.1} parent=0 // pred_region
    _
  $region9: #{multimodal_forward.1} parent=0 // pred_fallthru
    _
  // Predicated region
  $region10: #{multimodal_forward.1} parent=0 // pred_check
    _
  $region11: #{multimodal_forward.1} parent=0 // pred_check_branch
    %16 = sbr.rel (0) target = $region13
  $region12: #{multimodal_forward.1} parent=0 // pred_region
    _
  $region13: #{multimodal_forward.1} parent=0 // pred_fallthru
    _
  // Predicated region
  $region14: #{multimodal_forward.1} parent=0 // pred_check
    _
  $region15: #{multimodal_forward.1} parent=0 // pred_check_branch
    %18 = sbr.rel (0) target = $region17
  $region16: #{multimodal_forward.1} parent=0 // pred_region
    _
  $region17: #{multimodal_forward.1} parent=0 // pred_fallthru
    _
  // Predicated region
  $region18: #{multimodal_forward.1} parent=0 // pred_check
    _
  $region19: #{multimodal_forward.1} parent=0 // pred_check_branch
    %20 = sbr.rel (0) target = $region21
  $region20: #{multimodal_forward.1} parent=0 // pred_region
    _
  $region21: #{multimodal_forward.1} parent=0 // pred_fallthru
    _
  // Predicated region
  $region22: #{multimodal_forward.1} parent=0 // pred_check
    _
  $region23: #{multimodal_forward.1} parent=0 // pred_check_branch
    %22 = sbr.rel (0) target = $region25
  $region24: #{multimodal_forward.1} parent=0 // pred_region
    _
  $region25: #{multimodal_forward.1} parent=0 // pred_fallthru
    _
  %v24 = vld [vmem:[%s0] sm:$0xff]
  %v25 = vld [vmem:[%s0 + $0x8] sm:$0xff]
  %v26 = vpack.c.bf16 %v25, %v24
  %v27 = vld [vmem:[%s4] sm:$0xf]
  %v28 = vld [vmem:[%s4 + $0x4] sm:$0xf]
  %v29 = vld [vmem:[%s4 + $0x8] sm:$0xf]
  %v30 = vld [vmem:[%s4 + $0xc] sm:$0xf]
  %v31 = vld [vmem:[%s5] sm:$0x1]
  %v32 = vlaneseq
  %v33 = vshrl.u32 %v32, 7
  %v34 = vsub.s32 0, %v33
  %v35 = vrot.slane %v31, %v34
  %v40 = vunpack.c.l.b16 %v27
  %v41 = vunpack.c.l.b16 %v28
  %v42 = vunpack.c.l.b16 %v29
  %v43 = vunpack.c.l.b16 %v30
  %v44 = vpack.c.b16 %v41, %v40
  %v45 = vpack.c.b16 %v43, %v42
  %vm48 = vcmask 261120
  %v50 = vsel %vm48, %v26, 0
  %52 = vmatprep.subr.bf16.mxu0 0
  %53 = vmatpush1.bf16.msra.mxu0 0
  %54 = vmatprep.subr.bf16.mxu0 0
  %55 = vmatpush1.bf16.msra.mxu0 0
  %56 = vmatprep.subr.bf16.mxu0 0
  %57 = vmatpush1.bf16.msra.mxu0 0
  %58 = vmatprep.subr.bf16.mxu0 0
  %59 = vmatpush1.bf16.msra.mxu0 0
  %60 = vmatprep.subr.bf16.mxu0 0
  %61 = vmatpush1.bf16.msra.mxu0 0
  %62 = vmatprep.subr.bf16.mxu0 0
  %63 = vmatpush1.bf16.msra.mxu0 0
  %64 = vmatprep.subr.bf16.mxu0 0
  %65 = vmatpush1.bf16.msra.mxu0 %v45
  %66 = vmatprep.subr.bf16.mxu0 0
  %67 = vmatpush1.bf16.msra.mxu0 %v44
  %68 = vmatprep.subr.bf16.mxu0 0
  %69 = vmatpush2.bf16.msra.mxu0 0
  %70 = vmatprep.subr.bf16.mxu0 0
  %71 = vmatpush2.bf16.msra.mxu0 0
  %72 = vmatprep.subr.bf16.mxu0 0
  %73 = vmatpush2.bf16.msra.mxu0 0
  %74 = vmatprep.subr.bf16.mxu0 0
  %75 = vmatpush2.bf16.msra.mxu0 0
  %76 = vmatprep.subr.bf16.mxu0 0
  %77 = vmatpush2.bf16.msra.mxu0 0
  %78 = vmatprep.subr.bf16.mxu0 0
  %79 = vmatpush2.bf16.msra.mxu0 0
  %80 = vmatprep.subr.bf16.mxu0 0
  %81 = vmatpush2.bf16.msra.mxu0 0
  %82 = vmatprep.subr.bf16.mxu0 0
  %83 = vmatpush2.bf16.msra.mxu0 0
  %84 = vmatprep.mubr.bf16.mxu0 0
  %85 = vmatmul.mubr.bf16.gmra.mxu0 %v50
  %v86 = vpop.f32.mrf.mxu0
  %v87 = vadd.f32 %v35, %v86
  %v88 = vpop.f32.mrf.mxu0
  %v89 = vpop.f32.mrf.mxu0
  %v90 = vadd.f32 %v35, %v89
  %v91 = vpop.f32.mrf.mxu0
  %92 = vdwg.mxu0
  %v93 = vld [vmem:[%s4 + $0x10] sm:$0xf]
  %v94 = vld [vmem:[%s4 + $0x14] sm:$0xf]
  %v95 = vld [vmem:[%s4 + $0x18] sm:$0xf]
  %v96 = vld [vmem:[%s4 + $0x1c] sm:$0xf]
  %v97 = vld [vmem:[%s5 + $0x1] sm:$0x1]
  %v98 = vlaneseq
  %v99 = vshrl.u32 %v98, 7
  %v100 = vsub.s32 0, %v99
  %v101 = vrot.slane %v97, %v100
  %v106 = vunpack.c.l.b16 %v93
  %v107 = vunpack.c.l.b16 %v94
  %v108 = vunpack.c.l.b16 %v95
  %v109 = vunpack.c.l.b16 %v96
  %v110 = vpack.c.b16 %v107, %v106
  %v111 = vpack.c.b16 %v109, %v108
  %114 = vmatprep.subr.bf16.mxu0 0
  %115 = vmatpush1.bf16.msra.mxu0 0
  %116 = vmatprep.subr.bf16.mxu0 0
  %117 = vmatpush1.bf16.msra.mxu0 0
  %118 = vmatprep.subr.bf16.mxu0 0
  %119 = vmatpush1.bf16.msra.mxu0 0
  %120 = vmatprep.subr.bf16.mxu0 0
  %121 = vmatpush1.bf16.msra.mxu0 0
  %122 = vmatprep.subr.bf16.mxu0 0
  %123 = vmatpush1.bf16.msra.mxu0 0
  %124 = vmatprep.subr.bf16.mxu0 0
  %125 = vmatpush1.bf16.msra.mxu0 0
  %126 = vmatprep.subr.bf16.mxu0 0
  %127 = vmatpush1.bf16.msra.mxu0 %v111
  %128 = vmatprep.subr.bf16.mxu0 0
  %129 = vmatpush1.bf16.msra.mxu0 %v110
  %130 = vmatprep.subr.bf16.mxu0 0
  %131 = vmatpush2.bf16.msra.mxu0 0
  %132 = vmatprep.subr.bf16.mxu0 0
  %133 = vmatpush2.bf16.msra.mxu0 0
  %134 = vmatprep.subr.bf16.mxu0 0
  %135 = vmatpush2.bf16.msra.mxu0 0
  %136 = vmatprep.subr.bf16.mxu0 0
  %137 = vmatpush2.bf16.msra.mxu0 0
  %138 = vmatprep.subr.bf16.mxu0 0
  %139 = vmatpush2.bf16.msra.mxu0 0
  %140 = vmatprep.subr.bf16.mxu0 0
  %141 = vmatpush2.bf16.msra.mxu0 0
  %142 = vmatprep.subr.bf16.mxu0 0
  %143 = vmatpush2.bf16.msra.mxu0 0
  %144 = vmatprep.subr.bf16.mxu0 0
  %145 = vmatpush2.bf16.msra.mxu0 0
  %146 = vmatprep.mubr.bf16.mxu0 0
  %147 = vmatmul.mubr.bf16.gmra.mxu0 %v50
  %v148 = vpop.f32.mrf.mxu0
  %v149 = vadd.f32 %v101, %v148
  %v150 = vpop.f32.mrf.mxu0
  %v151 = vpop.f32.mrf.mxu0
  %v152 = vadd.f32 %v101, %v151
  %v153 = vpop.f32.mrf.mxu0
  %154 = vdwg.mxu0
  %v155 = vld [vmem:[%s4 + $0x20] sm:$0xf]
  %v156 = vld [vmem:[%s4 + $0x24] sm:$0xf]
  %v157 = vld [vmem:[%s4 + $0x28] sm:$0xf]
  %v158 = vld [vmem:[%s4 + $0x2c] sm:$0xf]
  %v159 = vld [vmem:[%s5 + $0x2] sm:$0x1]
  %v160 = vlaneseq
  %v161 = vshrl.u32 %v160, 7
  %v162 = vsub.s32 0, %v161
  %v163 = vrot.slane %v159, %v162
  %v168 = vunpack.c.l.b16 %v155
  %v169 = vunpack.c.l.b16 %v156
  %v170 = vunpack.c.l.b16 %v157
  %v171 = vunpack.c.l.b16 %v158
  %v172 = vpack.c.b16 %v169, %v168
  %v173 = vpack.c.b16 %v171, %v170
  %176 = vmatprep.subr.bf16.mxu0 0
  %177 = vmatpush1.bf16.msra.mxu0 0
  %178 = vmatprep.subr.bf16.mxu0 0
  %179 = vmatpush1.bf16.msra.mxu0 0
  %180 = vmatprep.subr.bf16.mxu0 0
  %181 = vmatpush1.bf16.msra.mxu0 0
  %182 = vmatprep.subr.bf16.mxu0 0
  %183 = vmatpush1.bf16.msra.mxu0 0
  %184 = vmatprep.subr.bf16.mxu0 0
  %185 = vmatpush1.bf16.msra.mxu0 0
  %186 = vmatprep.subr.bf16.mxu0 0
  %187 = vmatpush1.bf16.msra.mxu0 0
  %188 = vmatprep.subr.bf16.mxu0 0
  %189 = vmatpush1.bf16.msra.mxu0 %v173
  %190 = vmatprep.subr.bf16.mxu0 0
  %191 = vmatpush1.bf16.msra.mxu0 %v172
  %192 = vmatprep.subr.bf16.mxu0 0
  %193 = vmatpush2.bf16.msra.mxu0 0
  %194 = vmatprep.subr.bf16.mxu0 0
  %195 = vmatpush2.bf16.msra.mxu0 0
  %196 = vmatprep.subr.bf16.mxu0 0
  %197 = vmatpush2.bf16.msra.mxu0 0
  %198 = vmatprep.subr.bf16.mxu0 0
  %199 = vmatpush2.bf16.msra.mxu0 0
  %200 = vmatprep.subr.bf16.mxu0 0
  %201 = vmatpush2.bf16.msra.mxu0 0
  %202 = vmatprep.subr.bf16.mxu0 0
  %203 = vmatpush2.bf16.msra.mxu0 0
  %204 = vmatprep.subr.bf16.mxu0 0
  %205 = vmatpush2.bf16.msra.mxu0 0
  %206 = vmatprep.subr.bf16.mxu0 0
  %207 = vmatpush2.bf16.msra.mxu0 0
  %208 = vmatprep.mubr.bf16.mxu0 0
  %209 = vmatmul.mubr.bf16.gmra.mxu0 %v50
  %v210 = vpop.f32.mrf.mxu0
  %v211 = vadd.f32 %v163, %v210
  %v212 = vpop.f32.mrf.mxu0
  %v213 = vpop.f32.mrf.mxu0
  %v214 = vadd.f32 %v163, %v213
  %v215 = vpop.f32.mrf.mxu0
  %216 = vdwg.mxu0
  %v217 = vpack.c.bf16 %v87, %v87
  %v218 = vpack.c.bf16 %v90, %v90
  %v219 = vpack.c.bf16 %v149, %v149
  %v220 = vpack.c.bf16 %v152, %v152
  %v221 = vpack.c.bf16 %v211, %v211
  %v222 = vpack.c.bf16 %v214, %v214
  %v223 = vld [vmem:[%s1] sm:$0x1]
  %v224 = vld [vmem:[%s1 + $0x1] sm:$0x1]
  %v227 = vlaneseq
  %v228 = vshrl.u32 %v227, 7
  %v229 = vsub.s32 0, %v228
  %v230 = vrot.slane %v223, %v229
  %v231 = vlaneseq
  %v232 = vshrl.u32 %v231, 7
  %v233 = vsub.s32 0, %v232
  %v234 = vrot.slane %v224, %v233
  %v238 = vsel %vm48, %v217, 0
  %v241 = vsel %vm48, %v219, 0
  %243 = vmatprep.subr.bf16.mxu0 0
  %244 = vmatpush1.bf16.xpose.msra.mxu0 0
  %245 = vmatprep.subr.bf16.mxu0 0
  %246 = vmatpush1.bf16.xpose.msra.mxu0 0
  %247 = vmatprep.subr.bf16.mxu0 0
  %248 = vmatpush1.bf16.xpose.msra.mxu0 0
  %249 = vmatprep.subr.bf16.mxu0 0
  %250 = vmatpush1.bf16.xpose.msra.mxu0 0
  %251 = vmatprep.subr.bf16.mxu0 0
  %252 = vmatpush1.bf16.xpose.msra.mxu0 0
  %253 = vmatprep.subr.bf16.mxu0 0
  %254 = vmatpush1.bf16.xpose.msra.mxu0 0
  %255 = vmatprep.subr.bf16.mxu0 0
  %256 = vmatpush1.bf16.xpose.msra.mxu0 0
  %257 = vmatprep.subr.bf16.mxu0 0
  %258 = vmatpush1.bf16.xpose.msra.mxu0 %v241
  %259 = vmatprep.subr.bf16.mxu0 0
  %260 = vmatpush2.bf16.xpose.msra.mxu0 0
  %261 = vmatprep.subr.bf16.mxu0 0
  %262 = vmatpush2.bf16.xpose.msra.mxu0 0
  %263 = vmatprep.subr.bf16.mxu0 0
  %264 = vmatpush2.bf16.xpose.msra.mxu0 0
  %265 = vmatprep.subr.bf16.mxu0 0
  %266 = vmatpush2.bf16.xpose.msra.mxu0 0
  %267 = vmatprep.subr.bf16.mxu0 0
  %268 = vmatpush2.bf16.xpose.msra.mxu0 0
  %269 = vmatprep.subr.bf16.mxu0 0
  %270 = vmatpush2.bf16.xpose.msra.mxu0 0
  %271 = vmatprep.subr.bf16.mxu0 0
  %272 = vmatpush2.bf16.xpose.msra.mxu0 0
  %273 = vmatprep.subr.bf16.mxu0 0
  %274 = vmatpush2.bf16.xpose.msra.mxu0 0
  %275 = vmatprep.mubr.bf16.mxu0 0
  %276 = vmatmul.mubr.bf16.gmra.mxu0 %v238
  %v277 = vpop.f32.mrf.mxu0
  %v278 = vadd.f32 %v230, %v277
  %v279 = vpop.f32.mrf.mxu0
  %v280 = vpop.f32.mrf.mxu0
  %v281 = vpop.f32.mrf.mxu0
  %282 = vdwg.mxu0
  %v284 = vsel %vm48, %v218, 0
  %v287 = vsel %vm48, %v220, 0
  %289 = vmatprep.subr.bf16.mxu0 0
  %290 = vmatpush1.bf16.xpose.msra.mxu0 0
  %291 = vmatprep.subr.bf16.mxu0 0
  %292 = vmatpush1.bf16.xpose.msra.mxu0 0
  %293 = vmatprep.subr.bf16.mxu0 0
  %294 = vmatpush1.bf16.xpose.msra.mxu0 0
  %295 = vmatprep.subr.bf16.mxu0 0
  %296 = vmatpush1.bf16.xpose.msra.mxu0 0
  %297 = vmatprep.subr.bf16.mxu0 0
  %298 = vmatpush1.bf16.xpose.msra.mxu0 0
  %299 = vmatprep.subr.bf16.mxu0 0
  %300 = vmatpush1.bf16.xpose.msra.mxu0 0
  %301 = vmatprep.subr.bf16.mxu0 0
  %302 = vmatpush1.bf16.xpose.msra.mxu0 0
  %303 = vmatprep.subr.bf16.mxu0 0
  %304 = vmatpush1.bf16.xpose.msra.mxu0 %v287
  %305 = vmatprep.subr.bf16.mxu0 0
  %306 = vmatpush2.bf16.xpose.msra.mxu0 0
  %307 = vmatprep.subr.bf16.mxu0 0
  %308 = vmatpush2.bf16.xpose.msra.mxu0 0
  %309 = vmatprep.subr.bf16.mxu0 0
  %310 = vmatpush2.bf16.xpose.msra.mxu0 0
  %311 = vmatprep.subr.bf16.mxu0 0
  %312 = vmatpush2.bf16.xpose.msra.mxu0 0
  %313 = vmatprep.subr.bf16.mxu0 0
  %314 = vmatpush2.bf16.xpose.msra.mxu0 0
  %315 = vmatprep.subr.bf16.mxu0 0
  %316 = vmatpush2.bf16.xpose.msra.mxu0 0
  %317 = vmatprep.subr.bf16.mxu0 0
  %318 = vmatpush2.bf16.xpose.msra.mxu0 0
  %319 = vmatprep.subr.bf16.mxu0 0
  %320 = vmatpush2.bf16.xpose.msra.mxu0 0
  %321 = vmatprep.mubr.bf16.mxu0 0
  %322 = vmatmul.mubr.bf16.gmra.mxu0 %v284
  %v323 = vpop.f32.mrf.mxu0
  %v324 = vadd.f32 %v234, %v323
  %v325 = vpop.f32.mrf.mxu0
  %v326 = vpop.f32.mrf.mxu0
  %v327 = vpop.f32.mrf.mxu0
  %328 = vdwg.mxu0
  %vm329 = vcmask 64512
  %v330 = vsel %vm329, %v278, -inf
  %331 = vmax.xlane.f32.xlu0 %v330
  %v332 = vpop.xlane.xlu0 %331
  %v333 = vsel %vm329, %v324, -inf
  %334 = vmax.xlane.f32.xlu0 %v333
  %v335 = vpop.xlane.xlu0 %334
  %v336 = vsub.f32 %v278, %v332
  %v337 = vsub.f32 %v324, %v335
  %v338 = vmul.f32 %v336, 1.442695
  %v339 = vpow.pop %v338
  %v340 = vmul.f32 %v337, 1.442695
  %v341 = vpow.pop %v340
  %v342 = vsel %vm329, %v339, 0.0
  %343 = vadd.xlane.f32.xlu0 %v342
  %v344 = vpop.xlane.xlu0 %343
  %v345 = vsel %vm329, %v341, 0.0
  %346 = vadd.xlane.f32.xlu0 %v345
  %v347 = vpop.xlane.xlu0 %346
  %v348 = vrcp.pop %v344
  %v349 = vrcp.pop %v347
  %v350 = vmul.f32 %v339, %v348
  %v351 = vmul.f32 %v341, %v349
  %v352 = vpack.c.bf16 %v350, %v350
  %v353 = vpack.c.bf16 %v351, %v351
  %v355 = vsel %vm329, %v352, 0
  %vm357 = vcmask 1043456
  %v359 = vsel %vm357, %v221, 0
  %361 = vmatprep.subr.bf16.mxu0 0
  %362 = vmatpush1.bf16.msra.mxu0 0
  %363 = vmatprep.subr.bf16.mxu0 0
  %364 = vmatpush1.bf16.msra.mxu0 0
  %365 = vmatprep.subr.bf16.mxu0 0
  %366 = vmatpush1.bf16.msra.mxu0 0
  %367 = vmatprep.subr.bf16.mxu0 0
  %368 = vmatpush1.bf16.msra.mxu0 0
  %369 = vmatprep.subr.bf16.mxu0 0
  %370 = vmatpush1.bf16.msra.mxu0 0
  %371 = vmatprep.subr.bf16.mxu0 0
  %372 = vmatpush1.bf16.msra.mxu0 0
  %373 = vmatprep.subr.bf16.mxu0 0
  %374 = vmatpush1.bf16.msra.mxu0 0
  %375 = vmatprep.subr.bf16.mxu0 0
  %376 = vmatpush1.bf16.msra.mxu0 %v359
  %377 = vmatprep.subr.bf16.mxu0 0
  %378 = vmatpush2.bf16.msra.mxu0 0
  %379 = vmatprep.subr.bf16.mxu0 0
  %380 = vmatpush2.bf16.msra.mxu0 0
  %381 = vmatprep.subr.bf16.mxu0 0
  %382 = vmatpush2.bf16.msra.mxu0 0
  %383 = vmatprep.subr.bf16.mxu0 0
  %384 = vmatpush2.bf16.msra.mxu0 0
  %385 = vmatprep.subr.bf16.mxu0 0
  %386 = vmatpush2.bf16.msra.mxu0 0
  %387 = vmatprep.subr.bf16.mxu0 0
  %388 = vmatpush2.bf16.msra.mxu0 0
  %389 = vmatprep.subr.bf16.mxu0 0
  %390 = vmatpush2.bf16.msra.mxu0 0
  %391 = vmatprep.subr.bf16.mxu0 0
  %392 = vmatpush2.bf16.msra.mxu0 0
  %393 = vmatprep.mubr.bf16.mxu0 0
  %394 = vmatmul.mubr.bf16.gmra.mxu0 %v355
  %v395 = vpop.f32.mrf.mxu0
  %v396 = vadd.f32 0.0, %v395
  %v397 = vpop.f32.mrf.mxu0
  %v398 = vpop.f32.mrf.mxu0
  %v399 = vpop.f32.mrf.mxu0
  %400 = vdwg.mxu0
  %v402 = vsel %vm329, %v353, 0
  %v405 = vsel %vm357, %v222, 0
  %407 = vmatprep.subr.bf16.mxu0 0
  %408 = vmatpush1.bf16.msra.mxu0 0
  %409 = vmatprep.subr.bf16.mxu0 0
  %410 = vmatpush1.bf16.msra.mxu0 0
  %411 = vmatprep.subr.bf16.mxu0 0
  %412 = vmatpush1.bf16.msra.mxu0 0
  %413 = vmatprep.subr.bf16.mxu0 0
  %414 = vmatpush1.bf16.msra.mxu0 0
  %415 = vmatprep.subr.bf16.mxu0 0
  %416 = vmatpush1.bf16.msra.mxu0 0
  %417 = vmatprep.subr.bf16.mxu0 0
  %418 = vmatpush1.bf16.msra.mxu0 0
  %419 = vmatprep.subr.bf16.mxu0 0
  %420 = vmatpush1.bf16.msra.mxu0 0
  %421 = vmatprep.subr.bf16.mxu0 0
  %422 = vmatpush1.bf16.msra.mxu0 %v405
  %423 = vmatprep.subr.bf16.mxu0 0
  %424 = vmatpush2.bf16.msra.mxu0 0
  %425 = vmatprep.subr.bf16.mxu0 0
  %426 = vmatpush2.bf16.msra.mxu0 0
  %427 = vmatprep.subr.bf16.mxu0 0
  %428 = vmatpush2.bf16.msra.mxu0 0
  %429 = vmatprep.subr.bf16.mxu0 0
  %430 = vmatpush2.bf16.msra.mxu0 0
  %431 = vmatprep.subr.bf16.mxu0 0
  %432 = vmatpush2.bf16.msra.mxu0 0
  %433 = vmatprep.subr.bf16.mxu0 0
  %434 = vmatpush2.bf16.msra.mxu0 0
  %435 = vmatprep.subr.bf16.mxu0 0
  %436 = vmatpush2.bf16.msra.mxu0 0
  %437 = vmatprep.subr.bf16.mxu0 0
  %438 = vmatpush2.bf16.msra.mxu0 0
  %439 = vmatprep.mubr.bf16.mxu0 0
  %440 = vmatmul.mubr.bf16.gmra.mxu0 %v402
  %v441 = vpop.f32.mrf.mxu0
  %v442 = vadd.f32 0.0, %v441
  %v443 = vpop.f32.mrf.mxu0
  %v444 = vpop.f32.mrf.mxu0
  %v445 = vpop.f32.mrf.mxu0
  %446 = vdwg.mxu0
  %v447 = vpack.c.bf16 %v442, %v396
  %v448 = vld [vmem:[%s4 + $0x30] sm:$0xf]
  %v449 = vld [vmem:[%s4 + $0x34] sm:$0xf]
  %v450 = vld [vmem:[%s4 + $0x38] sm:$0xf]
  %v451 = vld [vmem:[%s4 + $0x3c] sm:$0xf]
  %v452 = vld [vmem:[%s5 + $0x3] sm:$0x1]
  %v453 = vlaneseq
  %v454 = vshrl.u32 %v453, 7
  %v455 = vsub.s32 0, %v454
  %v456 = vrot.slane %v452, %v455
  %v461 = vunpack.c.l.b16 %v448
  %v462 = vunpack.c.l.b16 %v449
  %v463 = vunpack.c.l.b16 %v450
  %v464 = vunpack.c.l.b16 %v451
  %v465 = vpack.c.b16 %v462, %v461
  %v466 = vpack.c.b16 %v464, %v463
  %v470 = vsel %vm48, %v447, 0
  %472 = vmatprep.subr.bf16.mxu0 0
  %473 = vmatpush1.bf16.msra.mxu0 0
  %474 = vmatprep.subr.bf16.mxu0 0
  %475 = vmatpush1.bf16.msra.mxu0 0
  %476 = vmatprep.subr.bf16.mxu0 0
  %477 = vmatpush1.bf16.msra.mxu0 0
  %478 = vmatprep.subr.bf16.mxu0 0
  %479 = vmatpush1.bf16.msra.mxu0 0
  %480 = vmatprep.subr.bf16.mxu0 0
  %481 = vmatpush1.bf16.msra.mxu0 0
  %482 = vmatprep.subr.bf16.mxu0 0
  %483 = vmatpush1.bf16.msra.mxu0 0
  %484 = vmatprep.subr.bf16.mxu0 0
  %485 = vmatpush1.bf16.msra.mxu0 %v466
  %486 = vmatprep.subr.bf16.mxu0 0
  %487 = vmatpush1.bf16.msra.mxu0 %v465
  %488 = vmatprep.subr.bf16.mxu0 0
  %489 = vmatpush2.bf16.msra.mxu0 0
  %490 = vmatprep.subr.bf16.mxu0 0
  %491 = vmatpush2.bf16.msra.mxu0 0
  %492 = vmatprep.subr.bf16.mxu0 0
  %493 = vmatpush2.bf16.msra.mxu0 0
  %494 = vmatprep.subr.bf16.mxu0 0
  %495 = vmatpush2.bf16.msra.mxu0 0
  %496 = vmatprep.subr.bf16.mxu0 0
  %497 = vmatpush2.bf16.msra.mxu0 0
  %498 = vmatprep.subr.bf16.mxu0 0
  %499 = vmatpush2.bf16.msra.mxu0 0
  %500 = vmatprep.subr.bf16.mxu0 0
  %501 = vmatpush2.bf16.msra.mxu0 0
  %502 = vmatprep.subr.bf16.mxu0 0
  %503 = vmatpush2.bf16.msra.mxu0 0
  %504 = vmatprep.mubr.bf16.mxu0 0
  %505 = vmatmul.mubr.bf16.gmra.mxu0 %v470
  %v506 = vpop.f32.mrf.mxu0
  %v507 = vadd.f32 %v456, %v506
  %v508 = vpop.f32.mrf.mxu0
  %v509 = vpop.f32.mrf.mxu0
  %v510 = vadd.f32 %v456, %v509
  %v511 = vpop.f32.mrf.mxu0
  %512 = vdwg.mxu0
  %v513 = vadd.f32 %v24, %v507
  %v514 = vadd.f32 %v25, %v510
  %v515 = vld [vmem:[%s5 + $0x4] sm:$0x1]
  %v516 = vld [vmem:[%s5 + $0x5] sm:$0x1]
  %v517 = vsel %vm48, %v513, 0.0
  %518 = vadd.xlane.f32.xlu0 %v517
  %v519 = vpop.xlane.xlu0 %518
  %v520 = vsel %vm48, %v514, 0.0
  %521 = vadd.xlane.f32.xlu0 %v520
  %v522 = vpop.xlane.xlu0 %521
  %v523 = vrcp.pop 32.0
  %v524 = vmul.f32 %v519, %v523
  %v525 = vmul.f32 %v522, %v523
  %v526 = vsub.f32 %v513, %v524
  %v527 = vsub.f32 %v514, %v525
  %v528 = vmul.f32 %v526, %v526
  %v529 = vmul.f32 %v527, %v527
  %v530 = vsel %vm48, %v528, 0.0
  %531 = vadd.xlane.f32.xlu0 %v530
  %v532 = vpop.xlane.xlu0 %531
  %v533 = vsel %vm48, %v529, 0.0
  %534 = vadd.xlane.f32.xlu0 %v533
  %v535 = vpop.xlane.xlu0 %534
  %v536 = vmul.f32 %v532, %v523
  %v537 = vmul.f32 %v535, %v523
  %v538 = vadd.f32 %v536, 1e-05
  %v539 = vadd.f32 %v537, 1e-05
  %v540 = vrsqrt.pop %v538
  %v541 = vrsqrt.pop %v539
  %v542 = vmul.f32 %v526, %v540
  %v543 = vmul.f32 %v527, %v541
  %v544 = vlaneseq
  %v545 = vshrl.u32 %v544, 7
  %v546 = vsub.s32 0, %v545
  %v547 = vrot.slane %v515, %v546
  %v548 = vmul.f32 %v542, %v547
  %v549 = vmul.f32 %v543, %v547
  %v550 = vlaneseq
  %v551 = vshrl.u32 %v550, 7
  %v552 = vsub.s32 0, %v551
  %v553 = vrot.slane %v516, %v552
  %v554 = vadd.f32 %v548, %v553
  %v555 = vadd.f32 %v549, %v553
  %v556 = vpack.c.bf16 %v555, %v554
  %v557 = vld [vmem:[%s4 + $0x40] sm:$0xf]
  %v558 = vld [vmem:[%s4 + $0x44] sm:$0xf]
  %v559 = vld [vmem:[%s4 + $0x48] sm:$0xf]
  %v560 = vld [vmem:[%s4 + $0x4c] sm:$0xf]
  %v561 = vld [vmem:[%s5 + $0x6] sm:$0x1]
  %v562 = vlaneseq
  %v563 = vshrl.u32 %v562, 7
  %v564 = vsub.s32 0, %v563
  %v565 = vrot.slane %v561, %v564
  %v570 = vunpack.c.l.b16 %v557
  %v571 = vunpack.c.l.b16 %v558
  %v572 = vunpack.c.l.b16 %v559
  %v573 = vunpack.c.l.b16 %v560
  %v574 = vpack.c.b16 %v571, %v570
  %v575 = vpack.c.b16 %v573, %v572
  %v579 = vsel %vm48, %v556, 0
  %581 = vmatprep.subr.bf16.mxu0 0
  %582 = vmatpush1.bf16.msra.mxu0 0
  %583 = vmatprep.subr.bf16.mxu0 0
  %584 = vmatpush1.bf16.msra.mxu0 0
  %585 = vmatprep.subr.bf16.mxu0 0
  %586 = vmatpush1.bf16.msra.mxu0 0
  %587 = vmatprep.subr.bf16.mxu0 0
  %588 = vmatpush1.bf16.msra.mxu0 0
  %589 = vmatprep.subr.bf16.mxu0 0
  %590 = vmatpush1.bf16.msra.mxu0 0
  %591 = vmatprep.subr.bf16.mxu0 0
  %592 = vmatpush1.bf16.msra.mxu0 0
  %593 = vmatprep.subr.bf16.mxu0 0
  %594 = vmatpush1.bf16.msra.mxu0 %v575
  %595 = vmatprep.subr.bf16.mxu0 0
  %596 = vmatpush1.bf16.msra.mxu0 %v574
  %597 = vmatprep.subr.bf16.mxu0 0
  %598 = vmatpush2.bf16.msra.mxu0 0
  %599 = vmatprep.subr.bf16.mxu0 0
  %600 = vmatpush2.bf16.msra.mxu0 0
  %601 = vmatprep.subr.bf16.mxu0 0
  %602 = vmatpush2.bf16.msra.mxu0 0
  %603 = vmatprep.subr.bf16.mxu0 0
  %604 = vmatpush2.bf16.msra.mxu0 0
  %605 = vmatprep.subr.bf16.mxu0 0
  %606 = vmatpush2.bf16.msra.mxu0 0
  %607 = vmatprep.subr.bf16.mxu0 0
  %608 = vmatpush2.bf16.msra.mxu0 0
  %609 = vmatprep.subr.bf16.mxu0 0
  %610 = vmatpush2.bf16.msra.mxu0 0
  %611 = vmatprep.subr.bf16.mxu0 0
  %612 = vmatpush2.bf16.msra.mxu0 0
  %613 = vmatprep.mubr.bf16.mxu0 0
  %614 = vmatmul.mubr.bf16.gmra.mxu0 %v579
  %v615 = vpop.f32.mrf.mxu0
  %v616 = vadd.f32 %v565, %v615
  %v617 = vpop.f32.mrf.mxu0
  %v618 = vpop.f32.mrf.mxu0
  %v619 = vadd.f32 %v565, %v618
  %v620 = vpop.f32.mrf.mxu0
  %621 = vdwg.mxu0
  %v622 = vmax.f32 %v616, 0.0
  %v623 = vmax.f32 %v619, 0.0
  %v624 = vpack.c.bf16 %v623, %v622
  %v625 = vld [vmem:[%s4 + $0x50] sm:$0xf]
  %v626 = vld [vmem:[%s4 + $0x54] sm:$0xf]
  %v627 = vld [vmem:[%s4 + $0x58] sm:$0xf]
  %v628 = vld [vmem:[%s4 + $0x5c] sm:$0xf]
  %v629 = vld [vmem:[%s4 + $0x60] sm:$0xf]
  %v630 = vld [vmem:[%s4 + $0x64] sm:$0xf]
  %v631 = vld [vmem:[%s4 + $0x68] sm:$0xf]
  %v632 = vld [vmem:[%s4 + $0x6c] sm:$0xf]
  %v633 = vld [vmem:[%s5 + $0x7] sm:$0x1]
  %v634 = vlaneseq
  %v635 = vshrl.u32 %v634, 7
  %v636 = vsub.s32 0, %v635
  %v637 = vrot.slane %v633, %v636
  %v646 = vunpack.c.l.b16 %v625
  %v647 = vunpack.c.l.b16 %v626
  %v648 = vunpack.c.l.b16 %v627
  %v649 = vunpack.c.l.b16 %v628
  %v650 = vunpack.c.l.b16 %v629
  %v651 = vunpack.c.l.b16 %v630
  %v652 = vunpack.c.l.b16 %v631
  %v653 = vunpack.c.l.b16 %v632
  %v654 = vpack.c.b16 %v647, %v646
  %v655 = vpack.c.b16 %v649, %v648
  %v656 = vpack.c.b16 %v651, %v650
  %v657 = vpack.c.b16 %v653, %v652
  %vm662 = vcmask 523264
  %v664 = vsel %vm662, %v624, 0
  %666 = vmatprep.subr.bf16.mxu0 0
  %667 = vmatpush1.bf16.msra.mxu0 0
  %668 = vmatprep.subr.bf16.mxu0 0
  %669 = vmatpush1.bf16.msra.mxu0 0
  %670 = vmatprep.subr.bf16.mxu0 0
  %671 = vmatpush1.bf16.msra.mxu0 0
  %672 = vmatprep.subr.bf16.mxu0 0
  %673 = vmatpush1.bf16.msra.mxu0 0
  %674 = vmatprep.subr.bf16.mxu0 0
  %675 = vmatpush1.bf16.msra.mxu0 %v657
  %676 = vmatprep.subr.bf16.mxu0 0
  %677 = vmatpush1.bf16.msra.mxu0 %v656
  %678 = vmatprep.subr.bf16.mxu0 0
  %679 = vmatpush1.bf16.msra.mxu0 %v655
  %680 = vmatprep.subr.bf16.mxu0 0
  %681 = vmatpush1.bf16.msra.mxu0 %v654
  %682 = vmatprep.subr.bf16.mxu0 0
  %683 = vmatpush2.bf16.msra.mxu0 0
  %684 = vmatprep.subr.bf16.mxu0 0
  %685 = vmatpush2.bf16.msra.mxu0 0
  %686 = vmatprep.subr.bf16.mxu0 0
  %687 = vmatpush2.bf16.msra.mxu0 0
  %688 = vmatprep.subr.bf16.mxu0 0
  %689 = vmatpush2.bf16.msra.mxu0 0
  %690 = vmatprep.subr.bf16.mxu0 0
  %691 = vmatpush2.bf16.msra.mxu0 0
  %692 = vmatprep.subr.bf16.mxu0 0
  %693 = vmatpush2.bf16.msra.mxu0 0
  %694 = vmatprep.subr.bf16.mxu0 0
  %695 = vmatpush2.bf16.msra.mxu0 0
  %696 = vmatprep.subr.bf16.mxu0 0
  %697 = vmatpush2.bf16.msra.mxu0 0
  %698 = vmatprep.mubr.bf16.mxu0 0
  %699 = vmatmul.mubr.bf16.gmra.mxu0 %v664
  %v700 = vpop.f32.mrf.mxu0
  %v701 = vadd.f32 %v637, %v700
  %v702 = vpop.f32.mrf.mxu0
  %v703 = vpop.f32.mrf.mxu0
  %v704 = vadd.f32 %v637, %v703
  %v705 = vpop.f32.mrf.mxu0
  %706 = vdwg.mxu0
  %v707 = vadd.f32 %v554, %v701
  %v708 = vadd.f32 %v555, %v704
  %v709 = vld [vmem:[%s5 + $0x8] sm:$0x1]
  %v710 = vld [vmem:[%s5 + $0x9] sm:$0x1]
  %v711 = vsel %vm48, %v707, 0.0
  %712 = vadd.xlane.f32.xlu0 %v711
  %v713 = vpop.xlane.xlu0 %712
  %v714 = vsel %vm48, %v708, 0.0
  %715 = vadd.xlane.f32.xlu0 %v714
  %v716 = vpop.xlane.xlu0 %715
  %v717 = vmul.f32 %v713, %v523
  %v718 = vmul.f32 %v716, %v523
  %v719 = vsub.f32 %v707, %v717
  %v720 = vsub.f32 %v708, %v718
  %v721 = vmul.f32 %v719, %v719
  %v722 = vmul.f32 %v720, %v720
  %v723 = vsel %vm48, %v721, 0.0
  %724 = vadd.xlane.f32.xlu0 %v723
  %v725 = vpop.xlane.xlu0 %724
  %v726 = vsel %vm48, %v722, 0.0
  %727 = vadd.xlane.f32.xlu0 %v726
  %v728 = vpop.xlane.xlu0 %727
  %v729 = vmul.f32 %v725, %v523
  %v730 = vmul.f32 %v728, %v523
  %v731 = vadd.f32 %v729, 1e-05
  %v732 = vadd.f32 %v730, 1e-05
  %v733 = vrsqrt.pop %v731
  %v734 = vrsqrt.pop %v732
  %v735 = vmul.f32 %v719, %v733
  %v736 = vmul.f32 %v720, %v734
  %v737 = vlaneseq
  %v738 = vshrl.u32 %v737, 7
  %v739 = vsub.s32 0, %v738
  %v740 = vrot.slane %v709, %v739
  %v741 = vmul.f32 %v735, %v740
  %v742 = vmul.f32 %v736, %v740
  %v743 = vlaneseq
  %v744 = vshrl.u32 %v743, 7
  %v745 = vsub.s32 0, %v744
  %v746 = vrot.slane %v710, %v745
  %v747 = vadd.f32 %v741, %v746
  %v748 = vadd.f32 %v742, %v746
  %v749 = vld [vmem:[%s2] sm:$0xff]
  %v750 = vld [vmem:[%s2 + $0x8] sm:$0xff]
  %v751 = vld [vmem:[%s2 + $0x10] sm:$0xff]
  %v752 = vld [vmem:[%s2 + $0x18] sm:$0xff]
  %v753 = vpack.c.bf16 %v750, %v749
  %v754 = vpack.c.bf16 %v752, %v751
  %v755 = vld [vmem:[%s4 + $0x70] sm:$0xf]
  %v756 = vld [vmem:[%s4 + $0x74] sm:$0xf]
  %v757 = vld [vmem:[%s4 + $0x78] sm:$0xf]
  %v758 = vld [vmem:[%s4 + $0x7c] sm:$0xf]
  %v759 = vld [vmem:[%s4 + $0x80] sm:$0xf]
  %v760 = vld [vmem:[%s4 + $0x84] sm:$0xf]
  %v761 = vld [vmem:[%s5 + $0xa] sm:$0x1]
  %v762 = vlaneseq
  %v763 = vshrl.u32 %v762, 7
  %v764 = vsub.s32 0, %v763
  %v765 = vrot.slane %v761, %v764
  %v772 = vunpack.c.l.b16 %v755
  %v773 = vunpack.c.l.b16 %v756
  %v774 = vunpack.c.l.b16 %v757
  %v775 = vunpack.c.l.b16 %v758
  %v776 = vunpack.c.l.b16 %v759
  %v777 = vunpack.c.l.b16 %v760
  %v778 = vpack.c.b16 %v773, %v772
  %v779 = vpack.c.b16 %v775, %v774
  %v780 = vpack.c.b16 %v777, %v776
  %vm784 = vcmask 392192
  %v786 = vsel %vm784, %v753, 0
  %v789 = vsel %vm784, %v754, 0
  %791 = vmatprep.subr.bf16.mxu0 0
  %792 = vmatpush1.bf16.msra.mxu0 0
  %793 = vmatprep.subr.bf16.mxu0 0
  %794 = vmatpush1.bf16.msra.mxu0 0
  %795 = vmatprep.subr.bf16.mxu0 0
  %796 = vmatpush1.bf16.msra.mxu0 0
  %797 = vmatprep.subr.bf16.mxu0 0
  %798 = vmatpush1.bf16.msra.mxu0 0
  %799 = vmatprep.subr.bf16.mxu0 0
  %800 = vmatpush1.bf16.msra.mxu0 0
  %801 = vmatprep.subr.bf16.mxu0 0
  %802 = vmatpush1.bf16.msra.mxu0 %v780
  %803 = vmatprep.subr.bf16.mxu0 0
  %804 = vmatpush1.bf16.msra.mxu0 %v779
  %805 = vmatprep.subr.bf16.mxu0 0
  %806 = vmatpush1.bf16.msra.mxu0 %v778
  %807 = vmatprep.subr.bf16.mxu0 0
  %808 = vmatpush2.bf16.msra.mxu0 0
  %809 = vmatprep.subr.bf16.mxu0 0
  %810 = vmatpush2.bf16.msra.mxu0 0
  %811 = vmatprep.subr.bf16.mxu0 0
  %812 = vmatpush2.bf16.msra.mxu0 0
  %813 = vmatprep.subr.bf16.mxu0 0
  %814 = vmatpush2.bf16.msra.mxu0 0
  %815 = vmatprep.subr.bf16.mxu0 0
  %816 = vmatpush2.bf16.msra.mxu0 0
  %817 = vmatprep.subr.bf16.mxu0 0
  %818 = vmatpush2.bf16.msra.mxu0 0
  %819 = vmatprep.subr.bf16.mxu0 0
  %820 = vmatpush2.bf16.msra.mxu0 0
  %821 = vmatprep.subr.bf16.mxu0 0
  %822 = vmatpush2.bf16.msra.mxu0 0
  %823 = vmatprep.mubr.bf16.mxu0 0
  %824 = vmatmul.mubr.bf16.gmra.mxu0 %v786
  %v825 = vpop.f32.mrf.mxu0
  %v826 = vadd.f32 %v765, %v825
  %v827 = vpop.f32.mrf.mxu0
  %v828 = vpop.f32.mrf.mxu0
  %v829 = vadd.f32 %v765, %v828
  %v830 = vpop.f32.mrf.mxu0
  %831 = vmatprep.mubr.bf16.mxu0 0
  %832 = vmatmul.mubr.bf16.gmra.mxu0 %v789
  %v833 = vpop.f32.mrf.mxu0
  %v834 = vadd.f32 %v765, %v833
  %v835 = vpop.f32.mrf.mxu0
  %v836 = vpop.f32.mrf.mxu0
  %v837 = vadd.f32 %v765, %v836
  %v838 = vpop.f32.mrf.mxu0
  %839 = vdwg.mxu0
  %v840 = vmax.f32 %v826, 0.0
  %v841 = vmax.f32 %v829, 0.0
  %v842 = vmax.f32 %v834, 0.0
  %v843 = vmax.f32 %v837, 0.0
  %v844 = vsel %vm662, %v840, 0.0
  %v845 = vsel %vm662, %v841, 0.0
  %v846 = vadd.f32 %v844, %v845
  %v847 = vrot.slane %v846, 4
  %v848 = vadd.f32 %v846, %v847
  %v849 = vrot.slane %v848, 2
  %v850 = vadd.f32 %v848, %v849
  %v851 = vrot.slane %v850, 1
  %v852 = vadd.f32 %v850, %v851
  %v853 = vsel %vm662, %v842, 0.0
  %v854 = vsel %vm662, %v843, 0.0
  %v855 = vadd.f32 %v853, %v854
  %v856 = vrot.slane %v855, 4
  %v857 = vadd.f32 %v855, %v856
  %v858 = vrot.slane %v857, 2
  %v859 = vadd.f32 %v857, %v858
  %v860 = vrot.slane %v859, 1
  %v861 = vadd.f32 %v859, %v860
  %v862 = vpack.c.bf16 %v852, %v852
  %v863 = vpack.c.bf16 %v861, %v861
  %v864 = vld [vmem:[%s4 + $0x88] sm:$0xf]
  %v865 = vld [vmem:[%s4 + $0x8c] sm:$0xf]
  %v866 = vld [vmem:[%s4 + $0x90] sm:$0xf]
  %v867 = vld [vmem:[%s4 + $0x94] sm:$0xf]
  %v868 = vld [vmem:[%s4 + $0x98] sm:$0xf]
  %v869 = vld [vmem:[%s4 + $0x9c] sm:$0xf]
  %v870 = vld [vmem:[%s4 + $0xa0] sm:$0xf]
  %v871 = vld [vmem:[%s4 + $0xa4] sm:$0xf]
  %v872 = vld [vmem:[%s5 + $0xb] sm:$0x1]
  %v873 = vlaneseq
  %v874 = vshrl.u32 %v873, 7
  %v875 = vsub.s32 0, %v874
  %v876 = vrot.slane %v872, %v875
  %v879 = vunpack.c.l.b16 %v862
  %v880 = vunpack.c.l.b16 %v863
  %vm881 = vcmask 1041409
  %v882 = vsel %vm881, %v880, %v879
  %v883 = vpack.c.b16 %v882, %v882
  %v892 = vunpack.c.l.b16 %v864
  %v893 = vunpack.c.l.b16 %v865
  %v894 = vunpack.c.l.b16 %v866
  %v895 = vunpack.c.l.b16 %v867
  %v896 = vunpack.c.l.b16 %v868
  %v897 = vunpack.c.l.b16 %v869
  %v898 = vunpack.c.l.b16 %v870
  %v899 = vunpack.c.l.b16 %v871
  %v900 = vpack.c.b16 %v893, %v892
  %v901 = vpack.c.b16 %v895, %v894
  %v902 = vpack.c.b16 %v897, %v896
  %v903 = vpack.c.b16 %v899, %v898
  %v909 = vsel %vm662, %v883, 0
  %911 = vmatprep.subr.bf16.mxu0 0
  %912 = vmatpush1.bf16.msra.mxu0 0
  %913 = vmatprep.subr.bf16.mxu0 0
  %914 = vmatpush1.bf16.msra.mxu0 0
  %915 = vmatprep.subr.bf16.mxu0 0
  %916 = vmatpush1.bf16.msra.mxu0 0
  %917 = vmatprep.subr.bf16.mxu0 0
  %918 = vmatpush1.bf16.msra.mxu0 0
  %919 = vmatprep.subr.bf16.mxu0 0
  %920 = vmatpush1.bf16.msra.mxu0 %v903
  %921 = vmatprep.subr.bf16.mxu0 0
  %922 = vmatpush1.bf16.msra.mxu0 %v902
  %923 = vmatprep.subr.bf16.mxu0 0
  %924 = vmatpush1.bf16.msra.mxu0 %v901
  %925 = vmatprep.subr.bf16.mxu0 0
  %926 = vmatpush1.bf16.msra.mxu0 %v900
  %927 = vmatprep.subr.bf16.mxu0 0
  %928 = vmatpush2.bf16.msra.mxu0 0
  %929 = vmatprep.subr.bf16.mxu0 0
  %930 = vmatpush2.bf16.msra.mxu0 0
  %931 = vmatprep.subr.bf16.mxu0 0
  %932 = vmatpush2.bf16.msra.mxu0 0
  %933 = vmatprep.subr.bf16.mxu0 0
  %934 = vmatpush2.bf16.msra.mxu0 0
  %935 = vmatprep.subr.bf16.mxu0 0
  %936 = vmatpush2.bf16.msra.mxu0 0
  %937 = vmatprep.subr.bf16.mxu0 0
  %938 = vmatpush2.bf16.msra.mxu0 0
  %939 = vmatprep.subr.bf16.mxu0 0
  %940 = vmatpush2.bf16.msra.mxu0 0
  %941 = vmatprep.subr.bf16.mxu0 0
  %942 = vmatpush2.bf16.msra.mxu0 0
  %943 = vmatprep.mubr.bf16.mxu0 0
  %944 = vmatmul.mubr.bf16.gmra.mxu0 %v909
  %v945 = vpop.f32.mrf.mxu0
  %v946 = vadd.f32 %v876, %v945
  %v947 = vpop.f32.mrf.mxu0
  %v948 = vpop.f32.mrf.mxu0
  %v949 = vpop.f32.mrf.mxu0
  %950 = vdwg.mxu0
  %v951 = vld [vmem:[%s3] sm:$0x3]
  %vm952 = vcmp.gt.f32.partialorder %v951, 0.0
  %v953 = vsel %vm952, 1, 0
  %954 = vset.pattern.permute.xlu0 0
  %955 = vperm.xlu0 %954, %v953
  %v956 = vpop.permute.xlu0 %955
  %vm957 = vcmp.eq.s32.totalorder %v956, 1
  %v958 = vsel %vm957, %v946, 0.0
  %v959 = vpack.c.bf16 %v747, %v747
  %v960 = vpack.c.bf16 %v748, %v748
  %v961 = vld [vmem:[%s4 + $0xa8] sm:$0xf]
  %v962 = vld [vmem:[%s4 + $0xac] sm:$0xf]
  %v963 = vld [vmem:[%s4 + $0xb0] sm:$0xf]
  %v964 = vld [vmem:[%s4 + $0xb4] sm:$0xf]
  %v965 = vpack.c.bf16 %v958, %v958
  %v966 = vld [vmem:[%s4 + $0xb8] sm:$0xf]
  %v967 = vld [vmem:[%s4 + $0xbc] sm:$0xf]
  %v968 = vld [vmem:[%s4 + $0xc0] sm:$0xf]
  %v969 = vld [vmem:[%s4 + $0xc4] sm:$0xf]
  %v970 = vld [vmem:[%s4 + $0xc8] sm:$0xf]
  %v971 = vld [vmem:[%s4 + $0xcc] sm:$0xf]
  %v972 = vld [vmem:[%s4 + $0xd0] sm:$0xf]
  %v973 = vld [vmem:[%s4 + $0xd4] sm:$0xf]
  %v982 = vunpack.c.l.b16 %v966
  %v983 = vunpack.c.l.b16 %v967
  %v984 = vunpack.c.l.b16 %v968
  %v985 = vunpack.c.l.b16 %v969
  %v986 = vunpack.c.l.b16 %v970
  %v987 = vunpack.c.l.b16 %v971
  %v988 = vunpack.c.l.b16 %v972
  %v989 = vunpack.c.l.b16 %v973
  %v990 = vpack.c.b16 %v983, %v982
  %v991 = vpack.c.b16 %v985, %v984
  %v992 = vpack.c.b16 %v987, %v986
  %v993 = vpack.c.b16 %v989, %v988
  %v999 = vsel %vm662, %v965, 0
  %1001 = vmatprep.subr.bf16.mxu0 0
  %1002 = vmatpush1.bf16.msra.mxu0 0
  %1003 = vmatprep.subr.bf16.mxu0 0
  %1004 = vmatpush1.bf16.msra.mxu0 0
  %1005 = vmatprep.subr.bf16.mxu0 0
  %1006 = vmatpush1.bf16.msra.mxu0 0
  %1007 = vmatprep.subr.bf16.mxu0 0
  %1008 = vmatpush1.bf16.msra.mxu0 0
  %1009 = vmatprep.subr.bf16.mxu0 0
  %1010 = vmatpush1.bf16.msra.mxu0 %v993
  %1011 = vmatprep.subr.bf16.mxu0 0
  %1012 = vmatpush1.bf16.msra.mxu0 %v992
  %1013 = vmatprep.subr.bf16.mxu0 0
  %1014 = vmatpush1.bf16.msra.mxu0 %v991
  %1015 = vmatprep.subr.bf16.mxu0 0
  %1016 = vmatpush1.bf16.msra.mxu0 %v990
  %1017 = vmatprep.subr.bf16.mxu0 0
  %1018 = vmatpush2.bf16.msra.mxu0 0
  %1019 = vmatprep.subr.bf16.mxu0 0
  %1020 = vmatpush2.bf16.msra.mxu0 0
  %1021 = vmatprep.subr.bf16.mxu0 0
  %1022 = vmatpush2.bf16.msra.mxu0 0
  %1023 = vmatprep.subr.bf16.mxu0 0
  %1024 = vmatpush2.bf16.msra.mxu0 0
  %1025 = vmatprep.subr.bf16.mxu0 0
  %1026 = vmatpush2.bf16.msra.mxu0 0
  %1027 = vmatprep.subr.bf16.mxu0 0
  %1028 = vmatpush2.bf16.msra.mxu0 0
  %1029 = vmatprep.subr.bf16.mxu0 0
  %1030 = vmatpush2.bf16.msra.mxu0 0
  %1031 = vmatprep.subr.bf16.mxu0 0
  %1032 = vmatpush2.bf16.msra.mxu0 0
  %1033 = vmatprep.mubr.bf16.mxu0 0
  %1034 = vmatmul.mubr.bf16.gmra.mxu0 %v999
  %v1035 = vpop.f32.mrf.mxu0
  %v1036 = vadd.f32 0.0, %v1035
  %v1037 = vpop.f32.mrf.mxu0
  %v1038 = vpop.f32.mrf.mxu0
  %v1039 = vpop.f32.mrf.mxu0
  %1040 = vdwg.mxu0
  %v1043 = vunpack.c.l.b16 %v959
  %v1044 = vunpack.c.l.b16 %v960
  %v1045 = vrot.slane %v1044, 7
  %v1046 = vsel %vm881, %v1045, %v1043
  %v1047 = vpack.c.b16 %v1046, %v1046
  %v1052 = vunpack.c.l.b16 %v961
  %v1053 = vunpack.c.l.b16 %v962
  %v1054 = vunpack.c.l.b16 %v963
  %v1055 = vunpack.c.l.b16 %v964
  %v1056 = vpack.c.b16 %v1053, %v1052
  %v1057 = vpack.c.b16 %v1055, %v1054
  %v1061 = vsel %vm48, %v1047, 0
  %1063 = vmatprep.subr.bf16.mxu0 0
  %1064 = vmatpush1.bf16.msra.mxu0 0
  %1065 = vmatprep.subr.bf16.mxu0 0
  %1066 = vmatpush1.bf16.msra.mxu0 0
  %1067 = vmatprep.subr.bf16.mxu0 0
  %1068 = vmatpush1.bf16.msra.mxu0 0
  %1069 = vmatprep.subr.bf16.mxu0 0
  %1070 = vmatpush1.bf16.msra.mxu0 0
  %1071 = vmatprep.subr.bf16.mxu0 0
  %1072 = vmatpush1.bf16.msra.mxu0 0
  %1073 = vmatprep.subr.bf16.mxu0 0
  %1074 = vmatpush1.bf16.msra.mxu0 0
  %1075 = vmatprep.subr.bf16.mxu0 0
  %1076 = vmatpush1.bf16.msra.mxu0 %v1057
  %1077 = vmatprep.subr.bf16.mxu0 0
  %1078 = vmatpush1.bf16.msra.mxu0 %v1056
  %1079 = vmatprep.subr.bf16.mxu0 0
  %1080 = vmatpush2.bf16.msra.mxu0 0
  %1081 = vmatprep.subr.bf16.mxu0 0
  %1082 = vmatpush2.bf16.msra.mxu0 0
  %1083 = vmatprep.subr.bf16.mxu0 0
  %1084 = vmatpush2.bf16.msra.mxu0 0
  %1085 = vmatprep.subr.bf16.mxu0 0
  %1086 = vmatpush2.bf16.msra.mxu0 0
  %1087 = vmatprep.subr.bf16.mxu0 0
  %1088 = vmatpush2.bf16.msra.mxu0 0
  %1089 = vmatprep.subr.bf16.mxu0 0
  %1090 = vmatpush2.bf16.msra.mxu0 0
  %1091 = vmatprep.subr.bf16.mxu0 0
  %1092 = vmatpush2.bf16.msra.mxu0 0
  %1093 = vmatprep.subr.bf16.mxu0 0
  %1094 = vmatpush2.bf16.msra.mxu0 0
  %1095 = vmatprep.mubr.bf16.mxu0 0
  %1096 = vmatmul.mubr.bf16.gmra.mxu0 %v1061
  %v1097 = vpop.f32.mrf.mxu0
  %v1098 = vadd.f32 %v1036, %v1097
  %v1099 = vpop.f32.mrf.mxu0
  %v1100 = vpop.f32.mrf.mxu0
  %v1101 = vpop.f32.mrf.mxu0
  %1102 = vdwg.mxu0
  %v1103 = vld [vmem:[%s5 + $0xc] sm:$0x1]
  %v1104 = vlaneseq
  %v1105 = vshrl.u32 %v1104, 7
  %v1106 = vsub.s32 0, %v1105
  %v1107 = vrot.slane %v1103, %v1106
  %v1108 = vadd.f32 %v1098, %v1107
  %v1109 = vmax.f32 %v1108, 0.0
  %v1110 = vld [vmem:[%s5 + $0xd] sm:$0x1]
  %v1111 = vld [vmem:[%s5 + $0xe] sm:$0x1]
  %v1112 = vlaneseq
  %v1113 = vshrl.u32 %v1112, 7
  %v1114 = vsub.s32 0, %v1113
  %v1115 = vrot.slane %v1110, %v1114
  %v1116 = vmul.f32 %v1109, %v1115
  %vm1117 = vcmask 254976
  %v1118 = vsel %vm1117, %v1116, 0.0
  %1119 = vadd.xlane.f32.xlu0 %v1118
  %v1120 = vpop.xlane.xlu0 %1119
  %v1121 = vlaneseq
  %v1122 = vshrl.u32 %v1121, 7
  %v1123 = vsub.s32 0, %v1122
  %v1124 = vrot.slane %v1111, %v1123
  %v1125 = vadd.f32 %v1120, %v1124
  %1127 = vset.pattern.permute.xlu0 0
  %1128 = vperm.xlu0 %1127, %v1125
  %v1129 = vpop.permute.xlu0 %1128
  %1131 = vst [vmem:[%s6] sm:$0x3] %v1129
  // Predicated region
  $region26: #{multimodal_forward.1} parent=0 // pred_check
    _
  $region27: #{multimodal_forward.1} parent=0 // pred_check_branch
    %1133 = sbr.rel (0) target = $region29
  $region28: #{multimodal_forward.1} parent=0 // pred_region
    _
  $region29: #{multimodal_forward.1} parent=0 // pred_fallthru
    _
  // Predicated region
  $region30: #{multimodal_forward.1} parent=0 // pred_check
    _
  $region31: #{multimodal_forward.1} parent=0 // pred_check_branch
    %1135 = sbr.rel (0) target = $region33
  $region32: #{multimodal_forward.1} parent=0 // pred_region
    _
  $region33: #{multimodal_forward.1} parent=0 // pred_fallthru
    _

</llo_original>
